<compile_context>
chip_gen: v5e
topology: v5e:2x2
jax: 0.10.0
libtpu: 0.0.40
codegen_flags: <defaults>
</compile_context>

<pallas_src>
import functools

import jax
import jax.numpy as jnp
from jax.experimental import pallas as pl
from jax.experimental.pallas import tpu as pltpu


# --------------------------------------------------------------------------- helpers
def _layernorm(x, w, b, eps):
    x = x.astype(jnp.float32)
    mean = jnp.mean(x, axis=-1, keepdims=True)
    var = jnp.mean(jnp.square(x - mean), axis=-1, keepdims=True)
    return (x - mean) * jax.lax.rsqrt(var + eps) * w + b


def _pick_batch_tile(B, S, max_rows=512):
    """Largest divisor Bt of B with Bt*S <= max_rows, keeping >=2 grid steps when B>1."""
    best = 1
    for bt in range(1, B + 1):
        if B % bt != 0:
            continue
        if bt * S > max_rows:
            continue
        if B // bt >= 2 or B <= 1:
            best = max(best, bt)
    return best


def _vmem_limit_bytes(bt, S, D, inter):
    """Generous scoped-VMEM estimate; clamped below v7x's 64 MiB physical VMEM."""
    weights = 2 * (D * 3 * D + D * D + 2 * D * inter)          # bf16 GEMM weights
    rows = bt * S
    acts = rows * (3 * D * 2 + 6 * D * 4 + 2 * inter * 4)      # qkv + f32 temporaries
    est = 2 * weights + 2 * acts + (4 << 20)
    return int(min(max(est, 32 << 20), 60 << 20))


# --------------------------------------------------------------------------- kernels
def encoder_layer_kernel(x_ref, keep_ref,
                         ln1w_ref, ln1b_ref, qkvw_ref, qkvb_ref,
                         ow_ref, ob_ref, ln2w_ref, ln2b_ref,
                         f1w_ref, f1b_ref, f2w_ref, f2b_ref,
                         out_ref, ctx_ref,
                         *, heads, head_dim, eps, scale):
    """One full CLIP encoder layer for a (Bt, S, D) batch tile."""
    Bt, S, D = x_ref.shape
    R = Bt * S

    # residual stream is bf16; flatten to (R, D) so all GEMMs have M = Bt*S rows
    x = x_ref[...].reshape(R, D)

    # ---- LayerNorm1 + fused QKV projection (single big-M GEMM) -------------------
    hn = _layernorm(x, ln1w_ref[...], ln1b_ref[...], eps)                   # (R, D) f32
    qkv = jnp.dot(hn.astype(jnp.bfloat16), qkvw_ref[...],
                  preferred_element_type=jnp.float32) + qkvb_ref[...]       # (R, 3D) f32
    qkv = qkv.astype(jnp.bfloat16).reshape(Bt, S, 3 * D)

    # ---- multi-head attention: per (batch-element, head), context -> VMEM scratch ---
    neg = jnp.finfo(jnp.float32).min
    row = jax.lax.broadcasted_iota(jnp.int32, (S, S), 0)                    # query index
    col = jax.lax.broadcasted_iota(jnp.int32, (S, S), 1)                    # key index
    causal = col <= row
    for b in range(Bt):
        keep_b = keep_ref[b] > 0.5                                          # (1, S) bool
        mask_b = causal & keep_b                                            # (S, S)
        for h in range(heads):
            lo = h * head_dim
            q = qkv[b, :, lo:lo + head_dim]                                 # (S, hd) bf16
            k = qkv[b, :, D + lo:D + lo + head_dim]
            v = qkv[b, :, 2 * D + lo:2 * D + lo + head_dim]
            # contract last dims of q and k directly (no explicit K^T relayout)
            s = jax.lax.dot_general(q, k, (((1,), (1,)), ((), ())),
                                    preferred_element_type=jnp.float32) * scale
            s = jnp.where(mask_b, s, neg)
            m = jnp.max(s, axis=-1, keepdims=True)
            p = jnp.exp(s - m)
            denom = jnp.sum(p, axis=-1, keepdims=True)
            probs = p * pl.reciprocal(denom, approx=True)
            ctx_ref[b, :, lo:lo + head_dim] = jnp.dot(
                probs.astype(jnp.bfloat16), v, preferred_element_type=jnp.float32)

    ctx = ctx_ref[...].reshape(R, D)                                        # (R, D) f32

    # ---- out_proj + residual + LayerNorm2 + MLP(quick_gelu) + residual -------------
    attn_out = jnp.dot(ctx.astype(jnp.bfloat16), ow_ref[...],
                       preferred_element_type=jnp.float32) + ob_ref[...]
    x1 = x.astype(jnp.float32) + attn_out                                   # residual 1

    hn2 = _layernorm(x1, ln2w_ref[...], ln2b_ref[...], eps)
    h = jnp.dot(hn2.astype(jnp.bfloat16), f1w_ref[...],
                preferred_element_type=jnp.float32) + f1b_ref[...]
    h = h * jax.nn.sigmoid(1.702 * h)                                       # quick_gelu
    y = jnp.dot(h.astype(jnp.bfloat16), f2w_ref[...],
                preferred_element_type=jnp.float32) + f2b_ref[...]

    out_ref[...] = (x1 + y).reshape(Bt, S, D).astype(out_ref.dtype)         # residual 2


def final_layernorm_kernel(x_ref, w_ref, b_ref, out_ref, *, eps):
    Bt, S, D = x_ref.shape
    x = x_ref[...].reshape(Bt * S, D)
    out_ref[...] = _layernorm(x, w_ref[...], b_ref[...], eps).reshape(Bt, S, D)


# ----------------------------------------------------------------- pallas_call wrappers
def run_encoder_layer(x, keep, p, *, heads, head_dim, eps, scale, bt):
    B, S, D = x.shape
    inter = p["fc1_w"].shape[1]
    full2 = lambda b: (0, 0)

    return pl.pallas_call(
        functools.partial(encoder_layer_kernel, heads=heads, head_dim=head_dim,
                          eps=eps, scale=scale),
        grid=(B // bt,),
        in_specs=[
            pl.BlockSpec((bt, S, D), lambda b: (b, 0, 0)),        # residual stream
            pl.BlockSpec((bt, 1, S), lambda b: (b, 0, 0)),        # padding keep mask
            pl.BlockSpec((1, D), full2),                          # ln1_w
            pl.BlockSpec((1, D), full2),                          # ln1_b
            pl.BlockSpec((D, 3 * D), full2),                      # qkv_w (fused)
            pl.BlockSpec((1, 3 * D), full2),                      # qkv_b
            pl.BlockSpec((D, D), full2),                          # o_w
            pl.BlockSpec((1, D), full2),                          # o_b
            pl.BlockSpec((1, D), full2),                          # ln2_w
            pl.BlockSpec((1, D), full2),                          # ln2_b
            pl.BlockSpec((D, inter), full2),                      # fc1_w
            pl.BlockSpec((1, inter), full2),                      # fc1_b
            pl.BlockSpec((inter, D), full2),                      # fc2_w
            pl.BlockSpec((1, D), full2),                          # fc2_b
        ],
        out_specs=pl.BlockSpec((bt, S, D), lambda b: (b, 0, 0)),
        out_shape=jax.ShapeDtypeStruct((B, S, D), jnp.bfloat16),
        scratch_shapes=[pltpu.VMEM((bt, S, D), jnp.float32)],     # per-head ctx store
        compiler_params=pltpu.CompilerParams(
            dimension_semantics=("parallel",),
            vmem_limit_bytes=_vmem_limit_bytes(bt, S, D, inter)),
    )(x, keep, p["ln1_w"], p["ln1_b"], p["qkv_w"], p["qkv_b"],
      p["o_w"], p["o_b"], p["ln2_w"], p["ln2_b"],
      p["fc1_w"], p["fc1_b"], p["fc2_w"], p["fc2_b"])


def run_final_layernorm(x, w, b, *, eps, bt):
    B, S, D = x.shape
    return pl.pallas_call(
        functools.partial(final_layernorm_kernel, eps=eps),
        grid=(B // bt,),
        in_specs=[
            pl.BlockSpec((bt, S, D), lambda i: (i, 0, 0)),
            pl.BlockSpec((1, D), lambda i: (0, 0)),
            pl.BlockSpec((1, D), lambda i: (0, 0)),
        ],
        out_specs=pl.BlockSpec((bt, S, D), lambda i: (i, 0, 0)),
        out_shape=jax.ShapeDtypeStruct((B, S, D), jnp.float32),
        compiler_params=pltpu.CompilerParams(dimension_semantics=("parallel",)),
    )(x, w, b)


# ---------------------------------------------------------------------- full forward
def clip_text_transformer(input_ids, attention_mask, params, cfg):
    """Full CLIPTextTransformer forward pass."""
    B, S = input_ids.shape
    D, H, eps = cfg["hidden"], cfg["heads"], cfg["eps"]
    head_dim = D // H
    scale = head_dim ** -0.5
    bt = _pick_batch_tile(B, S)

    # --- CLIPTextEmbeddings (gathers = XLA glue) ---
    tok = jnp.take(params["token_embedding"], input_ids, axis=0)            # (B, S, D)
    pos = params["position_embedding"][:S]                                  # (S, D)
    hidden = (tok + pos[None]).astype(jnp.bfloat16)                         # bf16 residual

    # --- padding keep-mask (1.0 keep / 0.0 masked); causal mask is built in-kernel ---
    if attention_mask is not None:
        keep = (attention_mask > 0).astype(jnp.float32).reshape(B, 1, S)
    else:
        keep = jnp.ones((B, 1, S), jnp.float32)

    # --- encoder layers (fused Pallas kernel per layer) ---
    for layer_params in params["layers"]:
        hidden = run_encoder_layer(hidden, keep, layer_params,
                                   heads=H, head_dim=head_dim, eps=eps,
                                   scale=scale, bt=bt)

    # --- final layer norm (Pallas) ---
    last_hidden_state = run_final_layernorm(
        hidden, params["final_ln_w"], params["final_ln_b"], eps=eps, bt=bt)

    # --- pooled output (EOS token) ---
    ids = input_ids.astype(jnp.int32)
    eos_token_id = cfg.get("eos_token_id", 2)
    if eos_token_id == 2:
        # legacy HF path: EOS assumed to have the largest token id
        eos_pos = jnp.argmax(ids, axis=-1)
    else:
        eos_pos = jnp.argmax((ids == eos_token_id).astype(jnp.int32), axis=-1)
    pooled_output = last_hidden_state[jnp.arange(B), eos_pos]

    return last_hidden_state, pooled_output


# --------------------------------------------------------------------------- params
def init_params(key, *, vocab, max_pos, hidden, heads, inter, layers):
    keys = list(jax.random.split(key, 2 + layers * 6))
    k_it = iter(keys)

    def normal(k, shape):
        return 0.02 * jax.random.normal(k, shape, dtype=jnp.float32)

    params = {
        "token_embedding": normal(next(k_it), (vocab, hidden)),
        "position_embedding": normal(next(k_it), (max_pos, hidden)),
        "final_ln_w": jnp.ones((1, hidden), jnp.float32),
        "final_ln_b": jnp.zeros((1, hidden), jnp.float32),
        "layers": [],
    }
    for _ in range(layers):
        kq, kk, kv, ko, k1, k2 = (next(k_it) for _ in range(6))
        q_w = normal(kq, (hidden, hidden))
        k_w = normal(kk, (hidden, hidden))
        v_w = normal(kv, (hidden, hidden))
        layer = {
            "ln1_w": jnp.ones((1, hidden), jnp.float32),
            "ln1_b": jnp.zeros((1, hidden), jnp.float32),
            # fused, lane-dense QKV weight (D, 3D) in bf16 (y = x @ W + b layout)
            "qkv_w": jnp.concatenate([q_w, k_w, v_w], axis=1).astype(jnp.bfloat16),
            "qkv_b": jnp.zeros((1, 3 * hidden), jnp.float32),
            "o_w": normal(ko, (hidden, hidden)).astype(jnp.bfloat16),
            "o_b": jnp.zeros((1, hidden), jnp.float32),
            "ln2_w": jnp.ones((1, hidden), jnp.float32),
            "ln2_b": jnp.zeros((1, hidden), jnp.float32),
            "fc1_w": normal(k1, (hidden, inter)).astype(jnp.bfloat16),
            "fc1_b": jnp.zeros((1, inter), jnp.float32),
            "fc2_w": normal(k2, (inter, hidden)).astype(jnp.bfloat16),
            "fc2_b": jnp.zeros((1, hidden), jnp.float32),
        }
        params["layers"].append(layer)
    return params


if __name__ == "__main__":
    # small CLIPTextConfig-like setup
    B, S = 2, 8
    HIDDEN, HEADS, INTER, LAYERS = 32, 4, 64, 2
    VOCAB, MAX_POS = 100, 16
    EPS = 1e-5

    key = jax.random.PRNGKey(0)
    k_params, k_ids = jax.random.split(key)
    params = init_params(k_params, vocab=VOCAB, max_pos=MAX_POS, hidden=HIDDEN,
                         heads=HEADS, inter=INTER, layers=LAYERS)

    input_ids = jax.random.randint(k_ids, (B, S), 0, VOCAB, dtype=jnp.int32)
    attention_mask = jnp.ones((B, S), dtype=jnp.int32)

    cfg = {"hidden": HIDDEN, "heads": HEADS, "eps": EPS, "eos_token_id": 2}
    last_hidden_state, pooled_output = clip_text_transformer(
        input_ids, attention_mask, params, cfg)
    jax.block_until_ready((last_hidden_state, pooled_output))

    assert last_hidden_state.shape == (B, S, HIDDEN)
    assert pooled_output.shape == (B, HIDDEN)
    assert bool(jnp.all(jnp.isfinite(last_hidden_state)))
    print("KERNEL_OK")
</pallas_src>

<mosaic_0001>
module attributes {stable_mosaic.version = 11 : i64} {
  func.func @encoder_layer_kernel(%arg0: i32, %arg1: memref<1x8x32xbf16, #tpu.memory_space<vmem>>, %arg2: memref<1x1x8xf32, #tpu.memory_space<vmem>>, %arg3: memref<1x32xf32, #tpu.memory_space<vmem>>, %arg4: memref<1x32xf32, #tpu.memory_space<vmem>>, %arg5: memref<32x96xbf16, #tpu.memory_space<vmem>>, %arg6: memref<1x96xf32, #tpu.memory_space<vmem>>, %arg7: memref<32x32xbf16, #tpu.memory_space<vmem>>, %arg8: memref<1x32xf32, #tpu.memory_space<vmem>>, %arg9: memref<1x32xf32, #tpu.memory_space<vmem>>, %arg10: memref<1x32xf32, #tpu.memory_space<vmem>>, %arg11: memref<32x64xbf16, #tpu.memory_space<vmem>>, %arg12: memref<1x64xf32, #tpu.memory_space<vmem>>, %arg13: memref<64x32xbf16, #tpu.memory_space<vmem>>, %arg14: memref<1x32xf32, #tpu.memory_space<vmem>>, %arg15: memref<1x8x32xbf16, #tpu.memory_space<vmem>>, %arg16: memref<1x8x32xf32, #tpu.memory_space<vmem>>) attributes {dimension_semantics = [#tpu.dimension_semantics<parallel>], iteration_bounds = array<i64: 2>, scalar_prefetch = 0 : i64, scratch_operands = 1 : i64, tpu.core_type = #tpu.core_type<tc>, window_params = [{transform_indices = @transform_0, window_bounds = array<i64: 1, 8, 32>}, {transform_indices = @transform_1, window_bounds = array<i64: 1, 1, 8>}, {pipeline_mode = #tpu.pipeline_mode<synchronous>, transform_indices = @transform_2, window_bounds = array<i64: 1, 32>}, {pipeline_mode = #tpu.pipeline_mode<synchronous>, transform_indices = @transform_3, window_bounds = array<i64: 1, 32>}, {pipeline_mode = #tpu.pipeline_mode<synchronous>, transform_indices = @transform_4, window_bounds = array<i64: 32, 96>}, {pipeline_mode = #tpu.pipeline_mode<synchronous>, transform_indices = @transform_5, window_bounds = array<i64: 1, 96>}, {pipeline_mode = #tpu.pipeline_mode<synchronous>, transform_indices = @transform_6, window_bounds = array<i64: 32, 32>}, {pipeline_mode = #tpu.pipeline_mode<synchronous>, transform_indices = @transform_7, window_bounds = array<i64: 1, 32>}, {pipeline_mode = #tpu.pipeline_mode<synchronous>, transform_indices = @transform_8, window_bounds = array<i64: 1, 32>}, {pipeline_mode = #tpu.pipeline_mode<synchronous>, transform_indices = @transform_9, window_bounds = array<i64: 1, 32>}, {pipeline_mode = #tpu.pipeline_mode<synchronous>, transform_indices = @transform_10, window_bounds = array<i64: 32, 64>}, {pipeline_mode = #tpu.pipeline_mode<synchronous>, transform_indices = @transform_11, window_bounds = array<i64: 1, 64>}, {pipeline_mode = #tpu.pipeline_mode<synchronous>, transform_indices = @transform_12, window_bounds = array<i64: 64, 32>}, {pipeline_mode = #tpu.pipeline_mode<synchronous>, transform_indices = @transform_13, window_bounds = array<i64: 1, 32>}, {transform_indices = @transform_14, window_bounds = array<i64: 1, 8, 32>}]} {
    %c0 = arith.constant 0 : index
    %c0_0 = arith.constant 0 : index
    %c0_1 = arith.constant 0 : index
    %0 = vector.load %arg1[%c0, %c0_0, %c0_1] : memref<1x8x32xbf16, #tpu.memory_space<vmem>>, vector<1x8x32xbf16>
    %1 = vector.shape_cast %0 : vector<1x8x32xbf16> to vector<8x32xbf16>
    %c0_2 = arith.constant 0 : index
    %c0_3 = arith.constant 0 : index
    %2 = vector.load %arg3[%c0_2, %c0_3] : memref<1x32xf32, #tpu.memory_space<vmem>>, vector<1x32xf32>
    %c0_4 = arith.constant 0 : index
    %c0_5 = arith.constant 0 : index
    %3 = vector.load %arg4[%c0_4, %c0_5] : memref<1x32xf32, #tpu.memory_space<vmem>>, vector<1x32xf32>
    %4 = arith.extf %1 : vector<8x32xbf16> to vector<8x32xf32>
    %cst = arith.constant dense<0.000000e+00> : vector<8xf32>
    %5 = vector.multi_reduction <add>, %4, %cst [1] : vector<8x32xf32> to vector<8xf32>
    %6 = vector.shape_cast %5 : vector<8xf32> to vector<8x1xf32>
    %cst_6 = arith.constant 3.200000e+01 : f32
    %7 = vector.broadcast %cst_6 : f32 to vector<8x1xf32>
    %8 = arith.divf %6, %7 : vector<8x1xf32>
    %9 = vector.broadcast %8 : vector<8x1xf32> to vector<8x32xf32>
    %10 = arith.subf %4, %9 : vector<8x32xf32>
    %11 = arith.mulf %10, %10 : vector<8x32xf32>
    %cst_7 = arith.constant dense<0.000000e+00> : vector<8xf32>
    %12 = vector.multi_reduction <add>, %11, %cst_7 [1] : vector<8x32xf32> to vector<8xf32>
    %13 = vector.shape_cast %12 : vector<8xf32> to vector<8x1xf32>
    %cst_8 = arith.constant 3.200000e+01 : f32
    %14 = vector.broadcast %cst_8 : f32 to vector<8x1xf32>
    %15 = arith.divf %13, %14 : vector<8x1xf32>
    %16 = vector.broadcast %8 : vector<8x1xf32> to vector<8x32xf32>
    %17 = arith.subf %4, %16 : vector<8x32xf32>
    %cst_9 = arith.constant 9.99999974E-6 : f32
    %18 = vector.broadcast %cst_9 : f32 to vector<8x1xf32>
    %19 = arith.addf %15, %18 : vector<8x1xf32>
    %20 = math.rsqrt %19 : vector<8x1xf32>
    %21 = vector.broadcast %20 : vector<8x1xf32> to vector<8x32xf32>
    %22 = arith.mulf %17, %21 : vector<8x32xf32>
    %23 = vector.broadcast %2 : vector<1x32xf32> to vector<8x32xf32>
    %24 = arith.mulf %22, %23 : vector<8x32xf32>
    %25 = vector.broadcast %3 : vector<1x32xf32> to vector<8x32xf32>
    %26 = arith.addf %24, %25 : vector<8x32xf32>
    %27 = arith.truncf %26 : vector<8x32xf32> to vector<8x32xbf16>
    %c0_10 = arith.constant 0 : index
    %c0_11 = arith.constant 0 : index
    %28 = vector.load %arg5[%c0_10, %c0_11] : memref<32x96xbf16, #tpu.memory_space<vmem>>, vector<32x96xbf16>
    %cst_12 = arith.constant dense<0.000000e+00> : vector<8x96xf32>
    %29 = tpu.matmul %27, %28, %cst_12 {dimension_numbers = #tpu.dot_dimension_numbers<[1], [0], [0], [1], [0, 0, 1, 1], [], []>} : vector<8x32xbf16>, vector<32x96xbf16>, vector<8x96xf32> -> vector<8x96xf32>
    %c0_13 = arith.constant 0 : index
    %c0_14 = arith.constant 0 : index
    %30 = vector.load %arg6[%c0_13, %c0_14] : memref<1x96xf32, #tpu.memory_space<vmem>>, vector<1x96xf32>
    %31 = vector.broadcast %30 : vector<1x96xf32> to vector<8x96xf32>
    %32 = arith.addf %29, %31 : vector<8x96xf32>
    %33 = arith.truncf %32 : vector<8x96xf32> to vector<8x96xbf16>
    %34 = vector.shape_cast %33 : vector<8x96xbf16> to vector<1x8x96xbf16>
    %35 = tpu.iota {dimensions = array<i32: 0>} : vector<8x8xi32>
    %36 = tpu.iota {dimensions = array<i32: 1>} : vector<8x8xi32>
    %37 = arith.cmpi sle, %36, %35 : vector<8x8xi32>
    %c0_15 = arith.constant 0 : index
    %c0_16 = arith.constant 0 : index
    %c0_17 = arith.constant 0 : index
    %38 = vector.load %arg2[%c0_15, %c0_16, %c0_17] : memref<1x1x8xf32, #tpu.memory_space<vmem>>, vector<1x1x8xf32>
    %39 = vector.shape_cast %38 : vector<1x1x8xf32> to vector<1x8xf32>
    %cst_18 = arith.constant 5.000000e-01 : f32
    %40 = vector.broadcast %cst_18 : f32 to vector<1x8xf32>
    %41 = arith.cmpf ogt, %39, %40 : vector<1x8xf32>
    %42 = vector.broadcast %41 : vector<1x8xi1> to vector<8x8xi1>
    %43 = arith.andi %37, %42 : vector<8x8xi1>
    %44 = vector.extract_strided_slice %34 {offsets = [0, 0, 0], sizes = [1, 8, 8], strides = [1, 1, 1]} : vector<1x8x96xbf16> to vector<1x8x8xbf16>
    %45 = vector.shape_cast %44 : vector<1x8x8xbf16> to vector<8x8xbf16>
    %46 = vector.extract_strided_slice %34 {offsets = [0, 0, 32], sizes = [1, 8, 8], strides = [1, 1, 1]} : vector<1x8x96xbf16> to vector<1x8x8xbf16>
    %47 = vector.shape_cast %46 : vector<1x8x8xbf16> to vector<8x8xbf16>
    %48 = vector.extract_strided_slice %34 {offsets = [0, 0, 64], sizes = [1, 8, 8], strides = [1, 1, 1]} : vector<1x8x96xbf16> to vector<1x8x8xbf16>
    %49 = vector.shape_cast %48 : vector<1x8x8xbf16> to vector<8x8xbf16>
    %cst_19 = arith.constant dense<0.000000e+00> : vector<8x8xf32>
    %50 = tpu.matmul %45, %47, %cst_19 {dimension_numbers = #tpu.dot_dimension_numbers<[1], [1], [0], [0], [0, 0, 1, 0], [], []>} : vector<8x8xbf16>, vector<8x8xbf16>, vector<8x8xf32> -> vector<8x8xf32>
    %cst_20 = arith.constant 0.353553385 : f32
    %51 = vector.broadcast %cst_20 : f32 to vector<8x8xf32>
    %52 = arith.mulf %50, %51 : vector<8x8xf32>
    %cst_21 = arith.constant -3.40282347E+38 : f32
    %53 = vector.broadcast %cst_21 : f32 to vector<8x8xf32>
    %54 = arith.select %43, %52, %53 : vector<8x8xi1>, vector<8x8xf32>
    %cst_22 = arith.constant dense<0xFF800000> : vector<8xf32>
    %55 = vector.multi_reduction <maximumf>, %54, %cst_22 [1] : vector<8x8xf32> to vector<8xf32>
    %56 = vector.shape_cast %55 : vector<8xf32> to vector<8x1xf32>
    %57 = vector.broadcast %56 : vector<8x1xf32> to vector<8x8xf32>
    %58 = arith.subf %54, %57 : vector<8x8xf32>
    %59 = math.exp %58 : vector<8x8xf32>
    %cst_23 = arith.constant dense<0.000000e+00> : vector<8xf32>
    %60 = vector.multi_reduction <add>, %59, %cst_23 [1] : vector<8x8xf32> to vector<8xf32>
    %61 = vector.shape_cast %60 : vector<8xf32> to vector<8x1xf32>
    %62 = tpu.reciprocal %61 {approx = true} : vector<8x1xf32> -> vector<8x1xf32>
    %63 = vector.broadcast %62 : vector<8x1xf32> to vector<8x8xf32>
    %64 = arith.mulf %59, %63 : vector<8x8xf32>
    %65 = arith.truncf %64 : vector<8x8xf32> to vector<8x8xbf16>
    %cst_24 = arith.constant dense<0.000000e+00> : vector<8x8xf32>
    %66 = tpu.matmul %65, %49, %cst_24 {dimension_numbers = #tpu.dot_dimension_numbers<[1], [0], [0], [1], [0, 0, 1, 1], [], []>} : vector<8x8xbf16>, vector<8x8xbf16>, vector<8x8xf32> -> vector<8x8xf32>
    %c0_25 = arith.constant 0 : index
    %c0_26 = arith.constant 0 : index
    %c0_27 = arith.constant 0 : index
    %67 = vector.load %arg16[%c0_25, %c0_26, %c0_27] : memref<1x8x32xf32, #tpu.memory_space<vmem>>, vector<1x8x8xf32>
    %68 = vector.shape_cast %67 : vector<1x8x8xf32> to vector<8x8xf32>
    %69 = vector.shape_cast %66 : vector<8x8xf32> to vector<1x8x8xf32>
    tpu.vector_store %arg16[%c0_25, %c0_26, %c0_27], %69 {strides = array<i32>} : memref<1x8x32xf32, #tpu.memory_space<vmem>>, vector<1x8x8xf32>,
    %70 = vector.extract_strided_slice %34 {offsets = [0, 0, 8], sizes = [1, 8, 8], strides = [1, 1, 1]} : vector<1x8x96xbf16> to vector<1x8x8xbf16>
    %71 = vector.shape_cast %70 : vector<1x8x8xbf16> to vector<8x8xbf16>
    %72 = vector.extract_strided_slice %34 {offsets = [0, 0, 40], sizes = [1, 8, 8], strides = [1, 1, 1]} : vector<1x8x96xbf16> to vector<1x8x8xbf16>
    %73 = vector.shape_cast %72 : vector<1x8x8xbf16> to vector<8x8xbf16>
    %74 = vector.extract_strided_slice %34 {offsets = [0, 0, 72], sizes = [1, 8, 8], strides = [1, 1, 1]} : vector<1x8x96xbf16> to vector<1x8x8xbf16>
    %75 = vector.shape_cast %74 : vector<1x8x8xbf16> to vector<8x8xbf16>
    %cst_28 = arith.constant dense<0.000000e+00> : vector<8x8xf32>
    %76 = tpu.matmul %71, %73, %cst_28 {dimension_numbers = #tpu.dot_dimension_numbers<[1], [1], [0], [0], [0, 0, 1, 0], [], []>} : vector<8x8xbf16>, vector<8x8xbf16>, vector<8x8xf32> -> vector<8x8xf32>
    %cst_29 = arith.constant 0.353553385 : f32
    %77 = vector.broadcast %cst_29 : f32 to vector<8x8xf32>
    %78 = arith.mulf %76, %77 : vector<8x8xf32>
    %cst_30 = arith.constant -3.40282347E+38 : f32
    %79 = vector.broadcast %cst_30 : f32 to vector<8x8xf32>
    %80 = arith.select %43, %78, %79 : vector<8x8xi1>, vector<8x8xf32>
    %cst_31 = arith.constant dense<0xFF800000> : vector<8xf32>
    %81 = vector.multi_reduction <maximumf>, %80, %cst_31 [1] : vector<8x8xf32> to vector<8xf32>
    %82 = vector.shape_cast %81 : vector<8xf32> to vector<8x1xf32>
    %83 = vector.broadcast %82 : vector<8x1xf32> to vector<8x8xf32>
    %84 = arith.subf %80, %83 : vector<8x8xf32>
    %85 = math.exp %84 : vector<8x8xf32>
    %cst_32 = arith.constant dense<0.000000e+00> : vector<8xf32>
    %86 = vector.multi_reduction <add>, %85, %cst_32 [1] : vector<8x8xf32> to vector<8xf32>
    %87 = vector.shape_cast %86 : vector<8xf32> to vector<8x1xf32>
    %88 = tpu.reciprocal %87 {approx = true} : vector<8x1xf32> -> vector<8x1xf32>
    %89 = vector.broadcast %88 : vector<8x1xf32> to vector<8x8xf32>
    %90 = arith.mulf %85, %89 : vector<8x8xf32>
    %91 = arith.truncf %90 : vector<8x8xf32> to vector<8x8xbf16>
    %cst_33 = arith.constant dense<0.000000e+00> : vector<8x8xf32>
    %92 = tpu.matmul %91, %75, %cst_33 {dimension_numbers = #tpu.dot_dimension_numbers<[1], [0], [0], [1], [0, 0, 1, 1], [], []>} : vector<8x8xbf16>, vector<8x8xbf16>, vector<8x8xf32> -> vector<8x8xf32>
    %c0_34 = arith.constant 0 : index
    %c0_35 = arith.constant 0 : index
    %c8 = arith.constant 8 : index
    %93 = vector.load %arg16[%c0_34, %c0_35, %c8] : memref<1x8x32xf32, #tpu.memory_space<vmem>>, vector<1x8x8xf32>
    %94 = vector.shape_cast %93 : vector<1x8x8xf32> to vector<8x8xf32>
    %95 = vector.shape_cast %92 : vector<8x8xf32> to vector<1x8x8xf32>
    tpu.vector_store %arg16[%c0_34, %c0_35, %c8], %95 {strides = array<i32>} : memref<1x8x32xf32, #tpu.memory_space<vmem>>, vector<1x8x8xf32>,
    %96 = vector.extract_strided_slice %34 {offsets = [0, 0, 16], sizes = [1, 8, 8], strides = [1, 1, 1]} : vector<1x8x96xbf16> to vector<1x8x8xbf16>
    %97 = vector.shape_cast %96 : vector<1x8x8xbf16> to vector<8x8xbf16>
    %98 = vector.extract_strided_slice %34 {offsets = [0, 0, 48], sizes = [1, 8, 8], strides = [1, 1, 1]} : vector<1x8x96xbf16> to vector<1x8x8xbf16>
    %99 = vector.shape_cast %98 : vector<1x8x8xbf16> to vector<8x8xbf16>
    %100 = vector.extract_strided_slice %34 {offsets = [0, 0, 80], sizes = [1, 8, 8], strides = [1, 1, 1]} : vector<1x8x96xbf16> to vector<1x8x8xbf16>
    %101 = vector.shape_cast %100 : vector<1x8x8xbf16> to vector<8x8xbf16>
    %cst_36 = arith.constant dense<0.000000e+00> : vector<8x8xf32>
    %102 = tpu.matmul %97, %99, %cst_36 {dimension_numbers = #tpu.dot_dimension_numbers<[1], [1], [0], [0], [0, 0, 1, 0], [], []>} : vector<8x8xbf16>, vector<8x8xbf16>, vector<8x8xf32> -> vector<8x8xf32>
    %cst_37 = arith.constant 0.353553385 : f32
    %103 = vector.broadcast %cst_37 : f32 to vector<8x8xf32>
    %104 = arith.mulf %102, %103 : vector<8x8xf32>
    %cst_38 = arith.constant -3.40282347E+38 : f32
    %105 = vector.broadcast %cst_38 : f32 to vector<8x8xf32>
    %106 = arith.select %43, %104, %105 : vector<8x8xi1>, vector<8x8xf32>
    %cst_39 = arith.constant dense<0xFF800000> : vector<8xf32>
    %107 = vector.multi_reduction <maximumf>, %106, %cst_39 [1] : vector<8x8xf32> to vector<8xf32>
    %108 = vector.shape_cast %107 : vector<8xf32> to vector<8x1xf32>
    %109 = vector.broadcast %108 : vector<8x1xf32> to vector<8x8xf32>
    %110 = arith.subf %106, %109 : vector<8x8xf32>
    %111 = math.exp %110 : vector<8x8xf32>
    %cst_40 = arith.constant dense<0.000000e+00> : vector<8xf32>
    %112 = vector.multi_reduction <add>, %111, %cst_40 [1] : vector<8x8xf32> to vector<8xf32>
    %113 = vector.shape_cast %112 : vector<8xf32> to vector<8x1xf32>
    %114 = tpu.reciprocal %113 {approx = true} : vector<8x1xf32> -> vector<8x1xf32>
    %115 = vector.broadcast %114 : vector<8x1xf32> to vector<8x8xf32>
    %116 = arith.mulf %111, %115 : vector<8x8xf32>
    %117 = arith.truncf %116 : vector<8x8xf32> to vector<8x8xbf16>
    %cst_41 = arith.constant dense<0.000000e+00> : vector<8x8xf32>
    %118 = tpu.matmul %117, %101, %cst_41 {dimension_numbers = #tpu.dot_dimension_numbers<[1], [0], [0], [1], [0, 0, 1, 1], [], []>} : vector<8x8xbf16>, vector<8x8xbf16>, vector<8x8xf32> -> vector<8x8xf32>
    %c0_42 = arith.constant 0 : index
    %c0_43 = arith.constant 0 : index
    %c16 = arith.constant 16 : index
    %119 = vector.load %arg16[%c0_42, %c0_43, %c16] : memref<1x8x32xf32, #tpu.memory_space<vmem>>, vector<1x8x8xf32>
    %120 = vector.shape_cast %119 : vector<1x8x8xf32> to vector<8x8xf32>
    %121 = vector.shape_cast %118 : vector<8x8xf32> to vector<1x8x8xf32>
    tpu.vector_store %arg16[%c0_42, %c0_43, %c16], %121 {strides = array<i32>} : memref<1x8x32xf32, #tpu.memory_space<vmem>>, vector<1x8x8xf32>,
    %122 = vector.extract_strided_slice %34 {offsets = [0, 0, 24], sizes = [1, 8, 8], strides = [1, 1, 1]} : vector<1x8x96xbf16> to vector<1x8x8xbf16>
    %123 = vector.shape_cast %122 : vector<1x8x8xbf16> to vector<8x8xbf16>
    %124 = vector.extract_strided_slice %34 {offsets = [0, 0, 56], sizes = [1, 8, 8], strides = [1, 1, 1]} : vector<1x8x96xbf16> to vector<1x8x8xbf16>
    %125 = vector.shape_cast %124 : vector<1x8x8xbf16> to vector<8x8xbf16>
    %126 = vector.extract_strided_slice %34 {offsets = [0, 0, 88], sizes = [1, 8, 8], strides = [1, 1, 1]} : vector<1x8x96xbf16> to vector<1x8x8xbf16>
    %127 = vector.shape_cast %126 : vector<1x8x8xbf16> to vector<8x8xbf16>
    %cst_44 = arith.constant dense<0.000000e+00> : vector<8x8xf32>
    %128 = tpu.matmul %123, %125, %cst_44 {dimension_numbers = #tpu.dot_dimension_numbers<[1], [1], [0], [0], [0, 0, 1, 0], [], []>} : vector<8x8xbf16>, vector<8x8xbf16>, vector<8x8xf32> -> vector<8x8xf32>
    %cst_45 = arith.constant 0.353553385 : f32
    %129 = vector.broadcast %cst_45 : f32 to vector<8x8xf32>
    %130 = arith.mulf %128, %129 : vector<8x8xf32>
    %cst_46 = arith.constant -3.40282347E+38 : f32
    %131 = vector.broadcast %cst_46 : f32 to vector<8x8xf32>
    %132 = arith.select %43, %130, %131 : vector<8x8xi1>, vector<8x8xf32>
    %cst_47 = arith.constant dense<0xFF800000> : vector<8xf32>
    %133 = vector.multi_reduction <maximumf>, %132, %cst_47 [1] : vector<8x8xf32> to vector<8xf32>
    %134 = vector.shape_cast %133 : vector<8xf32> to vector<8x1xf32>
    %135 = vector.broadcast %134 : vector<8x1xf32> to vector<8x8xf32>
    %136 = arith.subf %132, %135 : vector<8x8xf32>
    %137 = math.exp %136 : vector<8x8xf32>
    %cst_48 = arith.constant dense<0.000000e+00> : vector<8xf32>
    %138 = vector.multi_reduction <add>, %137, %cst_48 [1] : vector<8x8xf32> to vector<8xf32>
    %139 = vector.shape_cast %138 : vector<8xf32> to vector<8x1xf32>
    %140 = tpu.reciprocal %139 {approx = true} : vector<8x1xf32> -> vector<8x1xf32>
    %141 = vector.broadcast %140 : vector<8x1xf32> to vector<8x8xf32>
    %142 = arith.mulf %137, %141 : vector<8x8xf32>
    %143 = arith.truncf %142 : vector<8x8xf32> to vector<8x8xbf16>
    %cst_49 = arith.constant dense<0.000000e+00> : vector<8x8xf32>
    %144 = tpu.matmul %143, %127, %cst_49 {dimension_numbers = #tpu.dot_dimension_numbers<[1], [0], [0], [1], [0, 0, 1, 1], [], []>} : vector<8x8xbf16>, vector<8x8xbf16>, vector<8x8xf32> -> vector<8x8xf32>
    %c0_50 = arith.constant 0 : index
    %c0_51 = arith.constant 0 : index
    %c24 = arith.constant 24 : index
    %145 = vector.load %arg16[%c0_50, %c0_51, %c24] : memref<1x8x32xf32, #tpu.memory_space<vmem>>, vector<1x8x8xf32>
    %146 = vector.shape_cast %145 : vector<1x8x8xf32> to vector<8x8xf32>
    %147 = vector.shape_cast %144 : vector<8x8xf32> to vector<1x8x8xf32>
    tpu.vector_store %arg16[%c0_50, %c0_51, %c24], %147 {strides = array<i32>} : memref<1x8x32xf32, #tpu.memory_space<vmem>>, vector<1x8x8xf32>,
    %c0_52 = arith.constant 0 : index
    %c0_53 = arith.constant 0 : index
    %c0_54 = arith.constant 0 : index
    %148 = vector.load %arg16[%c0_52, %c0_53, %c0_54] : memref<1x8x32xf32, #tpu.memory_space<vmem>>, vector<1x8x32xf32>
    %149 = vector.shape_cast %148 : vector<1x8x32xf32> to vector<8x32xf32>
    %150 = arith.truncf %149 : vector<8x32xf32> to vector<8x32xbf16>
    %c0_55 = arith.constant 0 : index
    %c0_56 = arith.constant 0 : index
    %151 = vector.load %arg7[%c0_55, %c0_56] : memref<32x32xbf16, #tpu.memory_space<vmem>>, vector<32x32xbf16>
    %cst_57 = arith.constant dense<0.000000e+00> : vector<8x32xf32>
    %152 = tpu.matmul %150, %151, %cst_57 {dimension_numbers = #tpu.dot_dimension_numbers<[1], [0], [0], [1], [0, 0, 1, 1], [], []>} : vector<8x32xbf16>, vector<32x32xbf16>, vector<8x32xf32> -> vector<8x32xf32>
    %c0_58 = arith.constant 0 : index
    %c0_59 = arith.constant 0 : index
    %153 = vector.load %arg8[%c0_58, %c0_59] : memref<1x32xf32, #tpu.memory_space<vmem>>, vector<1x32xf32>
    %154 = vector.broadcast %153 : vector<1x32xf32> to vector<8x32xf32>
    %155 = arith.addf %152, %154 : vector<8x32xf32>
    %156 = arith.extf %1 : vector<8x32xbf16> to vector<8x32xf32>
    %157 = arith.addf %156, %155 : vector<8x32xf32>
    %c0_60 = arith.constant 0 : index
    %c0_61 = arith.constant 0 : index
    %158 = vector.load %arg9[%c0_60, %c0_61] : memref<1x32xf32, #tpu.memory_space<vmem>>, vector<1x32xf32>
    %c0_62 = arith.constant 0 : index
    %c0_63 = arith.constant 0 : index
    %159 = vector.load %arg10[%c0_62, %c0_63] : memref<1x32xf32, #tpu.memory_space<vmem>>, vector<1x32xf32>
    %cst_64 = arith.constant dense<0.000000e+00> : vector<8xf32>
    %160 = vector.multi_reduction <add>, %157, %cst_64 [1] : vector<8x32xf32> to vector<8xf32>
    %161 = vector.shape_cast %160 : vector<8xf32> to vector<8x1xf32>
    %cst_65 = arith.constant 3.200000e+01 : f32
    %162 = vector.broadcast %cst_65 : f32 to vector<8x1xf32>
    %163 = arith.divf %161, %162 : vector<8x1xf32>
    %164 = vector.broadcast %163 : vector<8x1xf32> to vector<8x32xf32>
    %165 = arith.subf %157, %164 : vector<8x32xf32>
    %166 = arith.mulf %165, %165 : vector<8x32xf32>
    %cst_66 = arith.constant dense<0.000000e+00> : vector<8xf32>
    %167 = vector.multi_reduction <add>, %166, %cst_66 [1] : vector<8x32xf32> to vector<8xf32>
    %168 = vector.shape_cast %167 : vector<8xf32> to vector<8x1xf32>
    %cst_67 = arith.constant 3.200000e+01 : f32
    %169 = vector.broadcast %cst_67 : f32 to vector<8x1xf32>
    %170 = arith.divf %168, %169 : vector<8x1xf32>
    %171 = vector.broadcast %163 : vector<8x1xf32> to vector<8x32xf32>
    %172 = arith.subf %157, %171 : vector<8x32xf32>
    %cst_68 = arith.constant 9.99999974E-6 : f32
    %173 = vector.broadcast %cst_68 : f32 to vector<8x1xf32>
    %174 = arith.addf %170, %173 : vector<8x1xf32>
    %175 = math.rsqrt %174 : vector<8x1xf32>
    %176 = vector.broadcast %175 : vector<8x1xf32> to vector<8x32xf32>
    %177 = arith.mulf %172, %176 : vector<8x32xf32>
    %178 = vector.broadcast %158 : vector<1x32xf32> to vector<8x32xf32>
    %179 = arith.mulf %177, %178 : vector<8x32xf32>
    %180 = vector.broadcast %159 : vector<1x32xf32> to vector<8x32xf32>
    %181 = arith.addf %179, %180 : vector<8x32xf32>
    %182 = arith.truncf %181 : vector<8x32xf32> to vector<8x32xbf16>
    %c0_69 = arith.constant 0 : index
    %c0_70 = arith.constant 0 : index
    %183 = vector.load %arg11[%c0_69, %c0_70] : memref<32x64xbf16, #tpu.memory_space<vmem>>, vector<32x64xbf16>
    %cst_71 = arith.constant dense<0.000000e+00> : vector<8x64xf32>
    %184 = tpu.matmul %182, %183, %cst_71 {dimension_numbers = #tpu.dot_dimension_numbers<[1], [0], [0], [1], [0, 0, 1, 1], [], []>} : vector<8x32xbf16>, vector<32x64xbf16>, vector<8x64xf32> -> vector<8x64xf32>
    %c0_72 = arith.constant 0 : index
    %c0_73 = arith.constant 0 : index
    %185 = vector.load %arg12[%c0_72, %c0_73] : memref<1x64xf32, #tpu.memory_space<vmem>>, vector<1x64xf32>
    %186 = vector.broadcast %185 : vector<1x64xf32> to vector<8x64xf32>
    %187 = arith.addf %184, %186 : vector<8x64xf32>
    %cst_74 = arith.constant 1.702000e+00 : f32
    %188 = vector.broadcast %cst_74 : f32 to vector<8x64xf32>
    %189 = arith.mulf %188, %187 : vector<8x64xf32>
    %190 = arith.negf %189 : vector<8x64xf32>
    %191 = math.exp %190 : vector<8x64xf32>
    %cst_75 = arith.constant 1.000000e+00 : f32
    %192 = vector.broadcast %cst_75 : f32 to vector<8x64xf32>
    %193 = arith.addf %192, %191 : vector<8x64xf32>
    %194 = arith.divf %192, %193 : vector<8x64xf32>
    %195 = arith.mulf %187, %194 : vector<8x64xf32>
    %196 = arith.truncf %195 : vector<8x64xf32> to vector<8x64xbf16>
    %c0_76 = arith.constant 0 : index
    %c0_77 = arith.constant 0 : index
    %197 = vector.load %arg13[%c0_76, %c0_77] : memref<64x32xbf16, #tpu.memory_space<vmem>>, vector<64x32xbf16>
    %cst_78 = arith.constant dense<0.000000e+00> : vector<8x32xf32>
    %198 = tpu.matmul %196, %197, %cst_78 {dimension_numbers = #tpu.dot_dimension_numbers<[1], [0], [0], [1], [0, 0, 1, 1], [], []>} : vector<8x64xbf16>, vector<64x32xbf16>, vector<8x32xf32> -> vector<8x32xf32>
    %c0_79 = arith.constant 0 : index
    %c0_80 = arith.constant 0 : index
    %199 = vector.load %arg14[%c0_79, %c0_80] : memref<1x32xf32, #tpu.memory_space<vmem>>, vector<1x32xf32>
    %200 = vector.broadcast %199 : vector<1x32xf32> to vector<8x32xf32>
    %201 = arith.addf %198, %200 : vector<8x32xf32>
    %202 = arith.addf %157, %201 : vector<8x32xf32>
    %203 = vector.shape_cast %202 : vector<8x32xf32> to vector<1x8x32xf32>
    %204 = arith.truncf %203 : vector<1x8x32xf32> to vector<1x8x32xbf16>
    %c0_81 = arith.constant 0 : index
    %c0_82 = arith.constant 0 : index
    %c0_83 = arith.constant 0 : index
    %205 = vector.load %arg15[%c0_81, %c0_82, %c0_83] : memref<1x8x32xbf16, #tpu.memory_space<vmem>>, vector<1x8x32xbf16>
    tpu.vector_store %arg15[%c0_81, %c0_82, %c0_83], %204 {strides = array<i32>} : memref<1x8x32xbf16, #tpu.memory_space<vmem>>, vector<1x8x32xbf16>,
    return
  }
  func.func @transform_0(%arg0: i32) -> (i32, i32, i32) {
    %c0_i32 = arith.constant 0 : i32
    %c0_i32_0 = arith.constant 0 : i32
    %c0_i32_1 = arith.constant 0 : i32
    return %arg0, %c0_i32, %c0_i32_0 : i32, i32, i32
  }
  func.func @transform_1(%arg0: i32) -> (i32, i32, i32) {
    %c0_i32 = arith.constant 0 : i32
    %c0_i32_0 = arith.constant 0 : i32
    %c0_i32_1 = arith.constant 0 : i32
    return %arg0, %c0_i32, %c0_i32_0 : i32, i32, i32
  }
  func.func @transform_2(%arg0: i32) -> (i32, i32) {
    %c0_i32 = arith.constant 0 : i32
    %c0_i32_0 = arith.constant 0 : i32
    %c0_i32_1 = arith.constant 0 : i32
    return %c0_i32, %c0_i32_0 : i32, i32
  }
  func.func @transform_3(%arg0: i32) -> (i32, i32) {
    %c0_i32 = arith.constant 0 : i32
    %c0_i32_0 = arith.constant 0 : i32
    %c0_i32_1 = arith.constant 0 : i32
    return %c0_i32, %c0_i32_0 : i32, i32
  }
  func.func @transform_4(%arg0: i32) -> (i32, i32) {
    %c0_i32 = arith.constant 0 : i32
    %c0_i32_0 = arith.constant 0 : i32
    %c0_i32_1 = arith.constant 0 : i32
    return %c0_i32, %c0_i32_0 : i32, i32
  }
  func.func @transform_5(%arg0: i32) -> (i32, i32) {
    %c0_i32 = arith.constant 0 : i32
    %c0_i32_0 = arith.constant 0 : i32
    %c0_i32_1 = arith.constant 0 : i32
    return %c0_i32, %c0_i32_0 : i32, i32
  }
  func.func @transform_6(%arg0: i32) -> (i32, i32) {
    %c0_i32 = arith.constant 0 : i32
    %c0_i32_0 = arith.constant 0 : i32
    %c0_i32_1 = arith.constant 0 : i32
    return %c0_i32, %c0_i32_0 : i32, i32
  }
  func.func @transform_7(%arg0: i32) -> (i32, i32) {
    %c0_i32 = arith.constant 0 : i32
    %c0_i32_0 = arith.constant 0 : i32
    %c0_i32_1 = arith.constant 0 : i32
    return %c0_i32, %c0_i32_0 : i32, i32
  }
  func.func @transform_8(%arg0: i32) -> (i32, i32) {
    %c0_i32 = arith.constant 0 : i32
    %c0_i32_0 = arith.constant 0 : i32
    %c0_i32_1 = arith.constant 0 : i32
    return %c0_i32, %c0_i32_0 : i32, i32
  }
  func.func @transform_9(%arg0: i32) -> (i32, i32) {
    %c0_i32 = arith.constant 0 : i32
    %c0_i32_0 = arith.constant 0 : i32
    %c0_i32_1 = arith.constant 0 : i32
    return %c0_i32, %c0_i32_0 : i32, i32
  }
  func.func @transform_10(%arg0: i32) -> (i32, i32) {
    %c0_i32 = arith.constant 0 : i32
    %c0_i32_0 = arith.constant 0 : i32
    %c0_i32_1 = arith.constant 0 : i32
    return %c0_i32, %c0_i32_0 : i32, i32
  }
  func.func @transform_11(%arg0: i32) -> (i32, i32) {
    %c0_i32 = arith.constant 0 : i32
    %c0_i32_0 = arith.constant 0 : i32
    %c0_i32_1 = arith.constant 0 : i32
    return %c0_i32, %c0_i32_0 : i32, i32
  }
  func.func @transform_12(%arg0: i32) -> (i32, i32) {
    %c0_i32 = arith.constant 0 : i32
    %c0_i32_0 = arith.constant 0 : i32
    %c0_i32_1 = arith.constant 0 : i32
    return %c0_i32, %c0_i32_0 : i32, i32
  }
  func.func @transform_13(%arg0: i32) -> (i32, i32) {
    %c0_i32 = arith.constant 0 : i32
    %c0_i32_0 = arith.constant 0 : i32
    %c0_i32_1 = arith.constant 0 : i32
    return %c0_i32, %c0_i32_0 : i32, i32
  }
  func.func @transform_14(%arg0: i32) -> (i32, i32, i32) {
    %c0_i32 = arith.constant 0 : i32
    %c0_i32_0 = arith.constant 0 : i32
    %c0_i32_1 = arith.constant 0 : i32
    return %arg0, %c0_i32, %c0_i32_0 : i32, i32, i32
  }
}

</mosaic_0001>

<llo_original>
// kernel: tpu_custom_call.1
$region0: #{tpu_custom_call.1}
  #allocation0 [shape = 'u32[]', space=smem, size = 0x4, offset = 0x4, fixed_abs, tag = 'smem constant byte address 0x4 - core index']
  #allocation1 [shape = 'u32[72,128]{1,0:T(1,128)}', space=vmem, size = 0x9000, scoped, tag = 'internal scratch']
  #allocation2 [shape = 'f32[1,8,32]{2,1,0:T(8,128)}', space=vmem, size = 0x1000, scoped, tag = 'scratch operand']
  %s0 = inlined_call_operand.hbm [shape: bf16[2,8,32], index: 0, kind: input, shape index: {}]
  %s1 = inlined_call_operand.hbm [shape: f32[2,1,8], index: 1, kind: input, shape index: {}]
  %s2 = inlined_call_operand.vmem [shape: f32[1,32], index: 2, kind: input, shape index: {}]
  %s3 = inlined_call_operand.vmem [shape: f32[1,32], index: 3, kind: input, shape index: {}]
  %s4 = inlined_call_operand.vmem [shape: bf16[32,96], index: 4, kind: input, shape index: {}]
  %s5 = inlined_call_operand.vmem [shape: f32[1,96], index: 5, kind: input, shape index: {}]
  %s6 = inlined_call_operand.vmem [shape: bf16[32,32], index: 6, kind: input, shape index: {}]
  %s7 = inlined_call_operand.vmem [shape: f32[1,32], index: 7, kind: input, shape index: {}]
  %s8 = inlined_call_operand.vmem [shape: f32[1,32], index: 8, kind: input, shape index: {}]
  %s9 = inlined_call_operand.vmem [shape: f32[1,32], index: 9, kind: input, shape index: {}]
  %s10 = inlined_call_operand.vmem [shape: bf16[32,64], index: 10, kind: input, shape index: {}]
  %s11 = inlined_call_operand.vmem [shape: f32[1,64], index: 11, kind: input, shape index: {}]
  %s12 = inlined_call_operand.vmem [shape: bf16[64,32], index: 12, kind: input, shape index: {}]
  %s13 = inlined_call_operand.vmem [shape: f32[1,32], index: 13, kind: input, shape index: {}]
  %s14 = inlined_call_operand.hbm [shape: bf16[2,8,32], index: 14, kind: output, shape index: {}]
  %s15 = sld [smem:[#allocation0]]
  $region97: #{tpu_custom_call.1} parent=0
    _
  %s17 = ssub.s32 1, %s15
  %s18 = scalar_select 0, %s17, %s15
  $region1: #{tpu_custom_call.1} parent=0
    #allocation3 [shape = 'u8[4096]{0}', space=vmem, size = 0x1000, scoped, tag = 'input window, operand 0']
    #allocation4 [shape = 's32[2]{0}', space=sflag, size = 0x8, scoped, tag = 'scoped memory for tpu_custom_call.1']
    #allocation5 [shape = 's32[2]{0}', space=sflag, size = 0x8, scoped, tag = 'scoped memory for tpu_custom_call.1']
    #allocation6 [shape = 'u8[1024]{0}', space=vmem, size = 0x400, scoped, tag = 'input window, operand 1']
    #allocation7 [shape = 's32[2]{0}', space=sflag, size = 0x8, scoped, tag = 'scoped memory for tpu_custom_call.1']
    #allocation8 [shape = 'u8[4096]{0}', space=vmem, size = 0x1000, scoped, tag = 'output window, operand 0']
    %19 = vsyncpa [#allocation4], 0
    %s20 = scalar_lea.sflag [#allocation4], 1
    %21 = vsyncpa %s20, 0
    %22 = vsyncpa [#allocation7], 0
    %s23 = scalar_lea.sflag [#allocation7], 1
    %24 = vsyncpa %s23, 0
    %25 = vsyncpa [#allocation5], 0
    %s26 = scalar_lea.sflag [#allocation5], 1
    %27 = vsyncpa %s26, 0
    loop: start=0, step=1, limit=4
    $region2: #{tpu_custom_call.1} parent=1 // loop_pre_header
      _
    $region3: #{tpu_custom_call.1} parent=1 // loop_header
      %s29 = sphi 0, %s33
      %p30 = scmp.ge.s32.totalorder %s29, 4
      %s39 = sphi 0, %s41
      %s42 = sphi 0, %s39
      %s43 = sphi 0, %s42
      %s59 = sphi 0, %s43
      %s65 = sphi 0, %s67
      %s68 = sphi 0, %s65
      %s69 = sphi 0, %s68
      %s85 = sphi 0, %s69
      %s89 = sphi 0, %s89
      %s91 = sphi 0, %s89
      %s92 = sphi 0, %s91
      %s106 = sphi 0, %s92
      %s110 = sphi 0, %s110
      %s112 = sphi 0, %s110
      %s113 = sphi 0, %s112
      %s127 = sphi 0, %s113
      %s131 = sphi 0, %s131
      %s133 = sphi 0, %s131
      %s134 = sphi 0, %s133
      %s148 = sphi 0, %s134
      %s152 = sphi 0, %s152
      %s154 = sphi 0, %s152
      %s155 = sphi 0, %s154
      %s169 = sphi 0, %s155
      %s173 = sphi 0, %s173
      %s175 = sphi 0, %s173
      %s176 = sphi 0, %s175
      %s190 = sphi 0, %s176
      %s194 = sphi 0, %s194
      %s196 = sphi 0, %s194
      %s197 = sphi 0, %s196
      %s211 = sphi 0, %s197
      %s215 = sphi 0, %s215
      %s217 = sphi 0, %s215
      %s218 = sphi 0, %s217
      %s232 = sphi 0, %s218
      %s236 = sphi 0, %s236
      %s238 = sphi 0, %s236
      %s239 = sphi 0, %s238
      %s253 = sphi 0, %s239
      %s257 = sphi 0, %s257
      %s259 = sphi 0, %s257
      %s260 = sphi 0, %s259
      %s274 = sphi 0, %s260
      %s278 = sphi 0, %s278
      %s280 = sphi 0, %s278
      %s281 = sphi 0, %s280
      %s295 = sphi 0, %s281
      %s299 = sphi 0, %s299
      %s301 = sphi 0, %s299
      %s302 = sphi 0, %s301
      %s316 = sphi 0, %s302
      %s320 = sphi 0, %s320
      %s322 = sphi 0, %s320
      %s323 = sphi 0, %s322
      %s337 = sphi 0, %s323
      %s343 = sphi 0, %s345
      %s346 = sphi 0, %s343
      %s347 = sphi 0, %s346
      %s363 = sphi 0, %s347
    $region4: #{tpu_custom_call.1} parent=1 // loop_header_branch
      %32 = sbr.rel (%p30) target = $region8
    $region5: #{tpu_custom_call.1} parent=1 // loop_body
      %s34 = ssub.s32 %s29, 1
      %s35 = ssub.s32 %s29, 2
      %s36 = sadd.s32 %s29, 1
      %s37 = ssub.s32 %s29, %s36
      %p38 = scmp.eq.s32.totalorder %s37, 0
      %s40 = sadd.s32 %s39, 1
      %s41 = scalar_select %p38, %s39, %s40
      %p44 = pneg %p38
      %p45 = scmp.eq.s32.totalorder %s29, 1
      %p46 = por %p44, %p45
      %p47 = scmp.ne.s32.totalorder %s39, %s42
      %p48 = scmp.eq.s32.totalorder %s29, 0
      %p49 = por %p47, %p48
      %p50 = scmp.ne.s32.totalorder %s39, %s42
      %p51 = scmp.eq.s32.totalorder %s34, 1
      %p52 = por %p50, %p51
      %p53 = scmp.ne.s32.totalorder %s42, %s43
      %p54 = scmp.eq.s32.totalorder %s34, 0
      %p55 = por %p53, %p54
      %p56 = scmp.ne.s32.totalorder %s42, %s43
      %p57 = scmp.eq.s32.totalorder %s35, 1
      %p58 = por %p56, %p57
      %p60 = scmp.ne.s32.totalorder %s43, %s59
      %p61 = scmp.eq.s32.totalorder %s35, 0
      %p62 = por %p60, %p61
      %s63 = ssub.s32 %s29, %s36
      %p64 = scmp.eq.s32.totalorder %s63, 0
      %s66 = sadd.s32 %s65, 1
      %s67 = scalar_select %p64, %s65, %s66
      %p70 = pneg %p64
      %p71 = scmp.eq.s32.totalorder %s29, 1
      %p72 = por %p70, %p71
      %p73 = scmp.ne.s32.totalorder %s65, %s68
      %p74 = scmp.eq.s32.totalorder %s29, 0
      %p75 = por %p73, %p74
      %p76 = scmp.ne.s32.totalorder %s65, %s68
      %p77 = scmp.eq.s32.totalorder %s34, 1
      %p78 = por %p76, %p77
      %p79 = scmp.ne.s32.totalorder %s68, %s69
      %p80 = scmp.eq.s32.totalorder %s34, 0
      %p81 = por %p79, %p80
      %p82 = scmp.ne.s32.totalorder %s68, %s69
      %p83 = scmp.eq.s32.totalorder %s35, 1
      %p84 = por %p82, %p83
      %p86 = scmp.ne.s32.totalorder %s69, %s85
      %p87 = scmp.eq.s32.totalorder %s35, 0
      %p88 = por %p86, %p87
      %s90 = sadd.s32 %s89, 1
      %p93 = scmp.eq.s32.totalorder %s29, 1
      %p94 = scmp.ne.s32.totalorder %s89, %s91
      %p95 = scmp.eq.s32.totalorder %s29, 0
      %p96 = por %p94, %p95
      %p97 = scmp.ne.s32.totalorder %s89, %s91
      %p98 = scmp.eq.s32.totalorder %s34, 1
      %p99 = por %p97, %p98
      %p100 = scmp.ne.s32.totalorder %s91, %s92
      %p101 = scmp.eq.s32.totalorder %s34, 0
      %p102 = por %p100, %p101
      %p103 = scmp.ne.s32.totalorder %s91, %s92
      %p104 = scmp.eq.s32.totalorder %s35, 1
      %p105 = por %p103, %p104
      %p107 = scmp.ne.s32.totalorder %s92, %s106
      %p108 = scmp.eq.s32.totalorder %s35, 0
      %p109 = por %p107, %p108
      %s111 = sadd.s32 %s110, 1
      %p114 = scmp.eq.s32.totalorder %s29, 1
      %p115 = scmp.ne.s32.totalorder %s110, %s112
      %p116 = scmp.eq.s32.totalorder %s29, 0
      %p117 = por %p115, %p116
      %p118 = scmp.ne.s32.totalorder %s110, %s112
      %p119 = scmp.eq.s32.totalorder %s34, 1
      %p120 = por %p118, %p119
      %p121 = scmp.ne.s32.totalorder %s112, %s113
      %p122 = scmp.eq.s32.totalorder %s34, 0
      %p123 = por %p121, %p122
      %p124 = scmp.ne.s32.totalorder %s112, %s113
      %p125 = scmp.eq.s32.totalorder %s35, 1
      %p126 = por %p124, %p125
      %p128 = scmp.ne.s32.totalorder %s113, %s127
      %p129 = scmp.eq.s32.totalorder %s35, 0
      %p130 = por %p128, %p129
      %s132 = sadd.s32 %s131, 1
      %p135 = scmp.eq.s32.totalorder %s29, 1
      %p136 = scmp.ne.s32.totalorder %s131, %s133
      %p137 = scmp.eq.s32.totalorder %s29, 0
      %p138 = por %p136, %p137
      %p139 = scmp.ne.s32.totalorder %s131, %s133
      %p140 = scmp.eq.s32.totalorder %s34, 1
      %p141 = por %p139, %p140
      %p142 = scmp.ne.s32.totalorder %s133, %s134
      %p143 = scmp.eq.s32.totalorder %s34, 0
      %p144 = por %p142, %p143
      %p145 = scmp.ne.s32.totalorder %s133, %s134
      %p146 = scmp.eq.s32.totalorder %s35, 1
      %p147 = por %p145, %p146
      %p149 = scmp.ne.s32.totalorder %s134, %s148
      %p150 = scmp.eq.s32.totalorder %s35, 0
      %p151 = por %p149, %p150
      %s153 = sadd.s32 %s152, 1
      %p156 = scmp.eq.s32.totalorder %s29, 1
      %p157 = scmp.ne.s32.totalorder %s152, %s154
      %p158 = scmp.eq.s32.totalorder %s29, 0
      %p159 = por %p157, %p158
      %p160 = scmp.ne.s32.totalorder %s152, %s154
      %p161 = scmp.eq.s32.totalorder %s34, 1
      %p162 = por %p160, %p161
      %p163 = scmp.ne.s32.totalorder %s154, %s155
      %p164 = scmp.eq.s32.totalorder %s34, 0
      %p165 = por %p163, %p164
      %p166 = scmp.ne.s32.totalorder %s154, %s155
      %p167 = scmp.eq.s32.totalorder %s35, 1
      %p168 = por %p166, %p167
      %p170 = scmp.ne.s32.totalorder %s155, %s169
      %p171 = scmp.eq.s32.totalorder %s35, 0
      %p172 = por %p170, %p171
      %s174 = sadd.s32 %s173, 1
      %p177 = scmp.eq.s32.totalorder %s29, 1
      %p178 = scmp.ne.s32.totalorder %s173, %s175
      %p179 = scmp.eq.s32.totalorder %s29, 0
      %p180 = por %p178, %p179
      %p181 = scmp.ne.s32.totalorder %s173, %s175
      %p182 = scmp.eq.s32.totalorder %s34, 1
      %p183 = por %p181, %p182
      %p184 = scmp.ne.s32.totalorder %s175, %s176
      %p185 = scmp.eq.s32.totalorder %s34, 0
      %p186 = por %p184, %p185
      %p187 = scmp.ne.s32.totalorder %s175, %s176
      %p188 = scmp.eq.s32.totalorder %s35, 1
      %p189 = por %p187, %p188
      %p191 = scmp.ne.s32.totalorder %s176, %s190
      %p192 = scmp.eq.s32.totalorder %s35, 0
      %p193 = por %p191, %p192
      %s195 = sadd.s32 %s194, 1
      %p198 = scmp.eq.s32.totalorder %s29, 1
      %p199 = scmp.ne.s32.totalorder %s194, %s196
      %p200 = scmp.eq.s32.totalorder %s29, 0
      %p201 = por %p199, %p200
      %p202 = scmp.ne.s32.totalorder %s194, %s196
      %p203 = scmp.eq.s32.totalorder %s34, 1
      %p204 = por %p202, %p203
      %p205 = scmp.ne.s32.totalorder %s196, %s197
      %p206 = scmp.eq.s32.totalorder %s34, 0
      %p207 = por %p205, %p206
      %p208 = scmp.ne.s32.totalorder %s196, %s197
      %p209 = scmp.eq.s32.totalorder %s35, 1
      %p210 = por %p208, %p209
      %p212 = scmp.ne.s32.totalorder %s197, %s211
      %p213 = scmp.eq.s32.totalorder %s35, 0
      %p214 = por %p212, %p213
      %s216 = sadd.s32 %s215, 1
      %p219 = scmp.eq.s32.totalorder %s29, 1
      %p220 = scmp.ne.s32.totalorder %s215, %s217
      %p221 = scmp.eq.s32.totalorder %s29, 0
      %p222 = por %p220, %p221
      %p223 = scmp.ne.s32.totalorder %s215, %s217
      %p224 = scmp.eq.s32.totalorder %s34, 1
      %p225 = por %p223, %p224
      %p226 = scmp.ne.s32.totalorder %s217, %s218
      %p227 = scmp.eq.s32.totalorder %s34, 0
      %p228 = por %p226, %p227
      %p229 = scmp.ne.s32.totalorder %s217, %s218
      %p230 = scmp.eq.s32.totalorder %s35, 1
      %p231 = por %p229, %p230
      %p233 = scmp.ne.s32.totalorder %s218, %s232
      %p234 = scmp.eq.s32.totalorder %s35, 0
      %p235 = por %p233, %p234
      %s237 = sadd.s32 %s236, 1
      %p240 = scmp.eq.s32.totalorder %s29, 1
      %p241 = scmp.ne.s32.totalorder %s236, %s238
      %p242 = scmp.eq.s32.totalorder %s29, 0
      %p243 = por %p241, %p242
      %p244 = scmp.ne.s32.totalorder %s236, %s238
      %p245 = scmp.eq.s32.totalorder %s34, 1
      %p246 = por %p244, %p245
      %p247 = scmp.ne.s32.totalorder %s238, %s239
      %p248 = scmp.eq.s32.totalorder %s34, 0
      %p249 = por %p247, %p248
      %p250 = scmp.ne.s32.totalorder %s238, %s239
      %p251 = scmp.eq.s32.totalorder %s35, 1
      %p252 = por %p250, %p251
      %p254 = scmp.ne.s32.totalorder %s239, %s253
      %p255 = scmp.eq.s32.totalorder %s35, 0
      %p256 = por %p254, %p255
      %s258 = sadd.s32 %s257, 1
      %p261 = scmp.eq.s32.totalorder %s29, 1
      %p262 = scmp.ne.s32.totalorder %s257, %s259
      %p263 = scmp.eq.s32.totalorder %s29, 0
      %p264 = por %p262, %p263
      %p265 = scmp.ne.s32.totalorder %s257, %s259
      %p266 = scmp.eq.s32.totalorder %s34, 1
      %p267 = por %p265, %p266
      %p268 = scmp.ne.s32.totalorder %s259, %s260
      %p269 = scmp.eq.s32.totalorder %s34, 0
      %p270 = por %p268, %p269
      %p271 = scmp.ne.s32.totalorder %s259, %s260
      %p272 = scmp.eq.s32.totalorder %s35, 1
      %p273 = por %p271, %p272
      %p275 = scmp.ne.s32.totalorder %s260, %s274
      %p276 = scmp.eq.s32.totalorder %s35, 0
      %p277 = por %p275, %p276
      %s279 = sadd.s32 %s278, 1
      %p282 = scmp.eq.s32.totalorder %s29, 1
      %p283 = scmp.ne.s32.totalorder %s278, %s280
      %p284 = scmp.eq.s32.totalorder %s29, 0
      %p285 = por %p283, %p284
      %p286 = scmp.ne.s32.totalorder %s278, %s280
      %p287 = scmp.eq.s32.totalorder %s34, 1
      %p288 = por %p286, %p287
      %p289 = scmp.ne.s32.totalorder %s280, %s281
      %p290 = scmp.eq.s32.totalorder %s34, 0
      %p291 = por %p289, %p290
      %p292 = scmp.ne.s32.totalorder %s280, %s281
      %p293 = scmp.eq.s32.totalorder %s35, 1
      %p294 = por %p292, %p293
      %p296 = scmp.ne.s32.totalorder %s281, %s295
      %p297 = scmp.eq.s32.totalorder %s35, 0
      %p298 = por %p296, %p297
      %s300 = sadd.s32 %s299, 1
      %p303 = scmp.eq.s32.totalorder %s29, 1
      %p304 = scmp.ne.s32.totalorder %s299, %s301
      %p305 = scmp.eq.s32.totalorder %s29, 0
      %p306 = por %p304, %p305
      %p307 = scmp.ne.s32.totalorder %s299, %s301
      %p308 = scmp.eq.s32.totalorder %s34, 1
      %p309 = por %p307, %p308
      %p310 = scmp.ne.s32.totalorder %s301, %s302
      %p311 = scmp.eq.s32.totalorder %s34, 0
      %p312 = por %p310, %p311
      %p313 = scmp.ne.s32.totalorder %s301, %s302
      %p314 = scmp.eq.s32.totalorder %s35, 1
      %p315 = por %p313, %p314
      %p317 = scmp.ne.s32.totalorder %s302, %s316
      %p318 = scmp.eq.s32.totalorder %s35, 0
      %p319 = por %p317, %p318
      %s321 = sadd.s32 %s320, 1
      %p324 = scmp.eq.s32.totalorder %s29, 1
      %p325 = scmp.ne.s32.totalorder %s320, %s322
      %p326 = scmp.eq.s32.totalorder %s29, 0
      %p327 = por %p325, %p326
      %p328 = scmp.ne.s32.totalorder %s320, %s322
      %p329 = scmp.eq.s32.totalorder %s34, 1
      %p330 = por %p328, %p329
      %p331 = scmp.ne.s32.totalorder %s322, %s323
      %p332 = scmp.eq.s32.totalorder %s34, 0
      %p333 = por %p331, %p332
      %p334 = scmp.ne.s32.totalorder %s322, %s323
      %p335 = scmp.eq.s32.totalorder %s35, 1
      %p336 = por %p334, %p335
      %p338 = scmp.ne.s32.totalorder %s323, %s337
      %p339 = scmp.eq.s32.totalorder %s35, 0
      %p340 = por %p338, %p339
      %s341 = ssub.s32 %s29, %s36
      %p342 = scmp.eq.s32.totalorder %s341, 0
      %s344 = sadd.s32 %s343, 1
      %s345 = scalar_select %p342, %s343, %s344
      %p348 = pneg %p342
      %p349 = scmp.eq.s32.totalorder %s29, 1
      %p350 = por %p348, %p349
      %p351 = scmp.ne.s32.totalorder %s343, %s346
      %p352 = scmp.eq.s32.totalorder %s29, 0
      %p353 = por %p351, %p352
      %p354 = scmp.ne.s32.totalorder %s343, %s346
      %p355 = scmp.eq.s32.totalorder %s34, 1
      %p356 = por %p354, %p355
      %p357 = scmp.ne.s32.totalorder %s346, %s347
      %p358 = scmp.eq.s32.totalorder %s34, 0
      %p359 = por %p357, %p358
      %p360 = scmp.ne.s32.totalorder %s346, %s347
      %p361 = scmp.eq.s32.totalorder %s35, 1
      %p362 = por %p360, %p361
      %p364 = scmp.ne.s32.totalorder %s347, %s363
      %p365 = scmp.eq.s32.totalorder %s35, 0
      %p366 = por %p364, %p365
      %p367 = scmp.le.s32.totalorder 1, %s29
      %p368 = scmp.lt.s32.totalorder %s29, 3
      %p369 = pnand %p367, %p368
      %p370 = pneg %p369
      // Predicated region
      $region9: #{tpu_custom_call.1} parent=5 // pred_check
        _
      $region10: #{tpu_custom_call.1} parent=5 // pred_check_branch
        %372 = sbr.rel (%p369) target = $region12
      $region11: #{tpu_custom_call.1} parent=5 // pred_region
        %s373 = ssub.s32 %s29, 1
        // Predicated region
        $region13: #{tpu_custom_call.1} parent=11 // pred_check
          %p374 = pneg %p102
        $region14: #{tpu_custom_call.1} parent=11 // pred_check_branch
          %376 = sbr.rel (%p374) target = $region16
        $region15: #{tpu_custom_call.1} parent=11 // pred_region
          _
        $region16: #{tpu_custom_call.1} parent=11 // pred_fallthru
          _
        // Predicated region
        $region17: #{tpu_custom_call.1} parent=11 // pred_check
          %p377 = pneg %p123
        $region18: #{tpu_custom_call.1} parent=11 // pred_check_branch
          %379 = sbr.rel (%p377) target = $region20
        $region19: #{tpu_custom_call.1} parent=11 // pred_region
          _
        $region20: #{tpu_custom_call.1} parent=11 // pred_fallthru
          _
        // Predicated region
        $region21: #{tpu_custom_call.1} parent=11 // pred_check
          %p380 = pneg %p144
        $region22: #{tpu_custom_call.1} parent=11 // pred_check_branch
          %382 = sbr.rel (%p380) target = $region24
        $region23: #{tpu_custom_call.1} parent=11 // pred_region
          _
        $region24: #{tpu_custom_call.1} parent=11 // pred_fallthru
          _
        // Predicated region
        $region25: #{tpu_custom_call.1} parent=11 // pred_check
          %p383 = pneg %p165
        $region26: #{tpu_custom_call.1} parent=11 // pred_check_branch
          %385 = sbr.rel (%p383) target = $region28
        $region27: #{tpu_custom_call.1} parent=11 // pred_region
          _
        $region28: #{tpu_custom_call.1} parent=11 // pred_fallthru
          _
        // Predicated region
        $region29: #{tpu_custom_call.1} parent=11 // pred_check
          %p386 = pneg %p186
        $region30: #{tpu_custom_call.1} parent=11 // pred_check_branch
          %388 = sbr.rel (%p386) target = $region32
        $region31: #{tpu_custom_call.1} parent=11 // pred_region
          _
        $region32: #{tpu_custom_call.1} parent=11 // pred_fallthru
          _
        // Predicated region
        $region33: #{tpu_custom_call.1} parent=11 // pred_check
          %p389 = pneg %p207
        $region34: #{tpu_custom_call.1} parent=11 // pred_check_branch
          %391 = sbr.rel (%p389) target = $region36
        $region35: #{tpu_custom_call.1} parent=11 // pred_region
          _
        $region36: #{tpu_custom_call.1} parent=11 // pred_fallthru
          _
        // Predicated region
        $region37: #{tpu_custom_call.1} parent=11 // pred_check
          %p392 = pneg %p228
        $region38: #{tpu_custom_call.1} parent=11 // pred_check_branch
          %394 = sbr.rel (%p392) target = $region40
        $region39: #{tpu_custom_call.1} parent=11 // pred_region
          _
        $region40: #{tpu_custom_call.1} parent=11 // pred_fallthru
          _
        // Predicated region
        $region41: #{tpu_custom_call.1} parent=11 // pred_check
          %p395 = pneg %p249
        $region42: #{tpu_custom_call.1} parent=11 // pred_check_branch
          %397 = sbr.rel (%p395) target = $region44
        $region43: #{tpu_custom_call.1} parent=11 // pred_region
          _
        $region44: #{tpu_custom_call.1} parent=11 // pred_fallthru
          _
        // Predicated region
        $region45: #{tpu_custom_call.1} parent=11 // pred_check
          %p398 = pneg %p270
        $region46: #{tpu_custom_call.1} parent=11 // pred_check_branch
          %400 = sbr.rel (%p398) target = $region48
        $region47: #{tpu_custom_call.1} parent=11 // pred_region
          _
        $region48: #{tpu_custom_call.1} parent=11 // pred_fallthru
          _
        // Predicated region
        $region49: #{tpu_custom_call.1} parent=11 // pred_check
          %p401 = pneg %p291
        $region50: #{tpu_custom_call.1} parent=11 // pred_check_branch
          %403 = sbr.rel (%p401) target = $region52
        $region51: #{tpu_custom_call.1} parent=11 // pred_region
          _
        $region52: #{tpu_custom_call.1} parent=11 // pred_fallthru
          _
        // Predicated region
        $region53: #{tpu_custom_call.1} parent=11 // pred_check
          %p404 = pneg %p312
        $region54: #{tpu_custom_call.1} parent=11 // pred_check_branch
          %406 = sbr.rel (%p404) target = $region56
        $region55: #{tpu_custom_call.1} parent=11 // pred_region
          _
        $region56: #{tpu_custom_call.1} parent=11 // pred_fallthru
          _
        // Predicated region
        $region57: #{tpu_custom_call.1} parent=11 // pred_check
          %p407 = pneg %p333
        $region58: #{tpu_custom_call.1} parent=11 // pred_check_branch
          %409 = sbr.rel (%p407) target = $region60
        $region59: #{tpu_custom_call.1} parent=11 // pred_region
          _
        $region60: #{tpu_custom_call.1} parent=11 // pred_fallthru
          _
      $region12: #{tpu_custom_call.1} parent=5 // pred_fallthru
        _
      %p410 = scmp.lt.s32.totalorder %s29, 2
      // Predicated region
      $region61: #{tpu_custom_call.1} parent=5 // pred_check
        %p411 = pneg %p410
      $region62: #{tpu_custom_call.1} parent=5 // pred_check_branch
        %413 = sbr.rel (%p411) target = $region64
      $region63: #{tpu_custom_call.1} parent=5 // pred_region
        // Predicated region
        $region65: #{tpu_custom_call.1} parent=63 // pred_check
          %p414 = pneg %p49
        $region66: #{tpu_custom_call.1} parent=63 // pred_check_branch
          %416 = sbr.rel (%p414) target = $region68
        $region67: #{tpu_custom_call.1} parent=63 // pred_region
          %s417 = sand.u32 %s39, 1
          %s418 = scalar_lea.sflag [#allocation4], %s417
          %s419 = sand.u32 %s39, 1
          %s420 = smul.addr %s419, 4
          %s421 = scalar_lea.vmem [#allocation3], %s420
          %423 = vsyncadd %s418, 0
          %s424 = smul.addr %s29, 4
          %s425 = scalar_lea.hbm %s0, %s424
          %s427 = sshll.u32 %s425, 4
          %s428 = int_to_ptr.hbm [resolvable:$true] %s427
          %s429 = sshll.u32 %s421, 4
          %s430 = int_to_ptr.vmem [resolvable:$true] %s429
          %432 = dma.hbm_to_vmem [thread:$0]  %s428, 64, %s430, %s418
        $region68: #{tpu_custom_call.1} parent=63 // pred_fallthru
          _
        // Predicated region
        $region69: #{tpu_custom_call.1} parent=63 // pred_check
          %p433 = pneg %p75
        $region70: #{tpu_custom_call.1} parent=63 // pred_check_branch
          %435 = sbr.rel (%p433) target = $region72
        $region71: #{tpu_custom_call.1} parent=63 // pred_region
          %s436 = sand.u32 %s65, 1
          %s437 = scalar_lea.sflag [#allocation7], %s436
          %s438 = sand.u32 %s65, 1
          %s439 = scalar_lea.vmem [#allocation6], %s438
          %441 = vsyncadd %s437, 0
          %s442 = scalar_lea.hbm %s1, %s29
          %s444 = sshll.u32 %s442, 4
          %s445 = int_to_ptr.hbm [resolvable:$true] %s444
          %s446 = sshll.u32 %s439, 4
          %s447 = int_to_ptr.vmem [resolvable:$true] %s446
          %449 = dma.hbm_to_vmem [thread:$0]  %s445, 16, %s447, %s437
        $region72: #{tpu_custom_call.1} parent=63 // pred_fallthru
          _
      $region64: #{tpu_custom_call.1} parent=5 // pred_fallthru
        _
      %p450 = scmp.le.s32.totalorder 1, %s29
      %p451 = scmp.lt.s32.totalorder %s29, 3
      %p452 = pnand %p450, %p451
      %p453 = pneg %p452
      // Predicated region
      $region73: #{tpu_custom_call.1} parent=5 // pred_check
        _
      $region74: #{tpu_custom_call.1} parent=5 // pred_check_branch
        %455 = sbr.rel (%p452) target = $region76
      $region75: #{tpu_custom_call.1} parent=5 // pred_region
        %s456 = ssub.s32 %s29, 1
        %s457 = sand.u32 %s42, 1
        %s458 = scalar_lea.sflag [#allocation4], %s457
        %s459 = sand.u32 %s42, 1
        %s460 = smul.addr %s459, 4
        %s461 = scalar_lea.vmem [#allocation3], %s460
        // Predicated region
        $region77: #{tpu_custom_call.1} parent=75 // pred_check
          %p462 = pneg %p55
        $region78: #{tpu_custom_call.1} parent=75 // pred_check_branch
          %464 = sbr.rel (%p462) target = $region80
        $region79: #{tpu_custom_call.1} parent=75 // pred_region
          %466 = dma.done %s458, 64
        $region80: #{tpu_custom_call.1} parent=75 // pred_fallthru
          _
        %s467 = sand.u32 %s68, 1
        %s468 = scalar_lea.sflag [#allocation7], %s467
        %s469 = sand.u32 %s68, 1
        %s470 = scalar_lea.vmem [#allocation6], %s469
        // Predicated region
        $region81: #{tpu_custom_call.1} parent=75 // pred_check
          %p471 = pneg %p81
        $region82: #{tpu_custom_call.1} parent=75 // pred_check_branch
          %473 = sbr.rel (%p471) target = $region84
        $region83: #{tpu_custom_call.1} parent=75 // pred_region
          %475 = dma.done %s468, 16
        $region84: #{tpu_custom_call.1} parent=75 // pred_fallthru
          _
        %s476 = sand.u32 %s42, 1
        %s477 = scalar_lea.sflag [#allocation4], %s476
        %s478 = sand.u32 %s42, 1
        %s479 = smul.addr %s478, 4
        %s480 = scalar_lea.vmem [#allocation3], %s479
        %p481 = pneg %p55
        %p482 = pneg %p52
        %s483 = sand.u32 %s68, 1
        %s484 = scalar_lea.sflag [#allocation7], %s483
        %s485 = sand.u32 %s68, 1
        %s486 = scalar_lea.vmem [#allocation6], %s485
        %p487 = pneg %p81
        %p488 = pneg %p78
        %p489 = pneg %p102
        %p490 = pneg %p99
        %p491 = pneg %p123
        %p492 = pneg %p120
        %p493 = pneg %p144
        %p494 = pneg %p141
        %p495 = pneg %p165
        %p496 = pneg %p162
        %p497 = pneg %p186
        %p498 = pneg %p183
        %p499 = pneg %p207
        %p500 = pneg %p204
        %p501 = pneg %p228
        %p502 = pneg %p225
        %p503 = pneg %p249
        %p504 = pneg %p246
        %p505 = pneg %p270
        %p506 = pneg %p267
        %p507 = pneg %p291
        %p508 = pneg %p288
        %p509 = pneg %p312
        %p510 = pneg %p309
        %p511 = pneg %p333
        %p512 = pneg %p330
        %p513 = pneg %p359
        %p514 = pneg %p356
        %s515 = sand.u32 %s346, 1
        %s516 = scalar_lea.sflag [#allocation5], %s515
        %s517 = sand.u32 %s346, 1
        %s518 = smul.addr %s517, 4
        %s519 = scalar_lea.vmem [#allocation8], %s518
        %v521 = vld [vmem:[%s461] sm:$0xf]
        %v522 = vld [vmem:[%s2] sm:$0x1]
        %v523 = vld [vmem:[%s3] sm:$0x1]
        %v524 = vunpack.c.l.bf16 %v521
        %vm525 = vcmask 261120
        %v526 = vsel %vm525, %v524, 0.0
        %527 = vadd.xlane.f32.xlu0 %v526
        %v528 = vpop.xlane.xlu0 %527
        %v529 = vrcp.pop 32.0
        %v530 = vmul.f32 32.0, %v529
        %v531 = vsub.f32 1.0, %v530
        %v532 = vmul.f32 %v529, %v531
        %v533 = vadd.f32 %v529, %v532
        %vm534 = vweird.f32 %v529
        %v535 = vsel %vm534, %v529, %v533
        %v536 = vmul.f32 %v528, %v535
        %v537 = vsub.f32 %v524, %v536
        %v538 = vmul.f32 %v537, %v537
        %v539 = vsel %vm525, %v538, 0.0
        %540 = vadd.xlane.f32.xlu0 %v539
        %v541 = vpop.xlane.xlu0 %540
        %v542 = vmul.f32 %v541, %v535
        %v543 = vadd.f32 %v542, 1e-05
        %v544 = vrsqrt.pop %v543
        %v545 = vmul.f32 %v544, %v543
        %v546 = vmul.f32 %v545, %v544
        %v547 = vmul.f32 0.5, %v546
        %v548 = vsub.f32 1.5, %v547
        %v549 = vmul.f32 %v544, %v548
        %vm550 = vweird.f32 %v543
        %vm551 = vweird.f32 %v544
        %vm552 = vmor %vm550, %vm551
        %v553 = vsel %vm552, %v544, %v549
        %v554 = vmul.f32 %v537, %v553
        %v556 = vperm.slane %v522, 0
        %v558 = vmul.f32 %v554, %v556
        %v560 = vperm.slane %v523, 0
        %v562 = vadd.f32 %v558, %v560
        %v563 = vpack.c.bf16 %v562, %v562
        %v564 = vld [vmem:[%s4] sm:$0xf]
        %v565 = vld [vmem:[%s4 + $0x4] sm:$0xf]
        %v566 = vld [vmem:[%s4 + $0x8] sm:$0xf]
        %v567 = vld [vmem:[%s4 + $0xc] sm:$0xf]
        %v568 = vld [vmem:[%s5] sm:$0x1]
        %v570 = vperm.slane %v568, 0
        %v576 = vunpack.c.l.b16 %v564
        %v577 = vunpack.c.l.b16 %v565
        %v578 = vunpack.c.l.b16 %v566
        %v579 = vunpack.c.l.b16 %v567
        %v580 = vpack.c.b16 %v577, %v576
        %v581 = vpack.c.b16 %v579, %v578
        %v585 = vsel %vm525, %v563, 0
        %587 = vmatpush.bf16.msra.mxu0 0
        %588 = vmatpush.bf16.msra.mxu0 0
        %589 = vmatpush.bf16.msra.mxu0 0
        %590 = vmatpush.bf16.msra.mxu0 0
        %591 = vmatpush.bf16.msra.mxu0 0
        %592 = vmatpush.bf16.msra.mxu0 0
        %593 = vmatpush.bf16.msra.mxu0 %v581
        %594 = vmatpush.bf16.msra.mxu0 %v580
        %595 = vmatmul.bf16.gmra.mxu0 %v585
        %v596 = vpop.f32.mrf.mxu0
        %v597 = vadd.f32 %v570, %v596
        %v598 = vpop.f32.mrf.mxu0
        %599 = vdwg.mxu0
        %v600 = vpack.c.bf16 %v597, %v597
        %v601 = vlaneseq
        %v602 = vshrl.u32 %v601, 7
        %v603 = vlaneseq
        %v604 = vand.u32 %v603, 127
        %vm605 = vcmp.le.s32.totalorder %v604, %v602
        %v606 = vld [vmem:[%s470] sm:$0x1]
        %vm607 = vcmp.gt.f32.partialorder %v606, 0.5
        %v608 = vsel %vm607, 1, 0
        %v609 = vperm.slane %v608, 0
        %vm610 = vcmp.eq.s32.totalorder %v609, 1
        %vm611 = vmand %vm605, %vm610
        %v613 = vunpack.c.l.b16 %v600
        %v614 = vpack.c.b16 %v613, %v613
        %615 = vrot.lane.b32.xlu0 %v614, 96
        %v616 = vpop.permute.xlu0 %615
        %vm617 = vcmask 64512
        %v619 = vsel %vm617, %v600, 0
        %v622 = vsel %vm617, %v616, 0
        %624 = vmatpush.bf16.xpose.msra.mxu0 0
        %625 = vmatpush.bf16.xpose.msra.mxu0 0
        %626 = vmatpush.bf16.xpose.msra.mxu0 0
        %627 = vmatpush.bf16.xpose.msra.mxu0 0
        %628 = vmatpush.bf16.xpose.msra.mxu0 0
        %629 = vmatpush.bf16.xpose.msra.mxu0 0
        %630 = vmatpush.bf16.xpose.msra.mxu0 0
        %631 = vmatpush.bf16.xpose.msra.mxu0 %v622
        %632 = vmatmul.bf16.gmra.mxu0 %v619
        %v633 = vpop.f32.mrf.mxu0
        %v634 = vadd.f32 0.0, %v633
        %v635 = vpop.f32.mrf.mxu0
        %636 = vdwg.mxu0
        %v637 = vmul.f32 %v634, 0.35355338
        %v638 = vsel %vm611, %v637, -3.4028235e+38
        %v639 = vsel %vm617, %v638, -inf
        %640 = vmax.xlane.f32.xlu0 %v639
        %v641 = vpop.xlane.xlu0 %640
        %v642 = vsub.f32 %v638, %v641
        %v643 = vmul.f32 %v642, 1.442695
        %v644 = vpow.pop %v643
        %v645 = vsel %vm617, %v644, 0.0
        %646 = vadd.xlane.f32.xlu0 %v645
        %v647 = vpop.xlane.xlu0 %646
        %v648 = vrcp.pop %v647
        %v649 = vmul.f32 %v644, %v648
        %v650 = vpack.c.bf16 %v649, %v649
        %651 = vrot.lane.b32.xlu0 %v614, 64
        %v652 = vpop.permute.xlu0 %651
        %v654 = vsel %vm617, %v650, 0
        %vm656 = vcmask 1043456
        %v658 = vsel %vm656, %v652, 0
        %660 = vmatpush.bf16.msra.mxu0 0
        %661 = vmatpush.bf16.msra.mxu0 0
        %662 = vmatpush.bf16.msra.mxu0 0
        %663 = vmatpush.bf16.msra.mxu0 0
        %664 = vmatpush.bf16.msra.mxu0 0
        %665 = vmatpush.bf16.msra.mxu0 0
        %666 = vmatpush.bf16.msra.mxu0 0
        %667 = vmatpush.bf16.msra.mxu0 %v658
        %668 = vmatmul.bf16.gmra.mxu0 %v654
        %v669 = vpop.f32.mrf.mxu0
        %v670 = vadd.f32 0.0, %v669
        %v671 = vpop.f32.mrf.mxu0
        %672 = vdwg.mxu0
        %673 = vst.msk [vmem:[#allocation2] sm:$0xff] %vm617, %v670
        %674 = vrot.lane.b32.xlu0 %v614, 120
        %v675 = vpop.permute.xlu0 %674
        %676 = vrot.lane.b32.xlu0 %v614, 88
        %v677 = vpop.permute.xlu0 %676
        %v679 = vsel %vm617, %v675, 0
        %v682 = vsel %vm617, %v677, 0
        %684 = vmatpush.bf16.xpose.msra.mxu0 0
        %685 = vmatpush.bf16.xpose.msra.mxu0 0
        %686 = vmatpush.bf16.xpose.msra.mxu0 0
        %687 = vmatpush.bf16.xpose.msra.mxu0 0
        %688 = vmatpush.bf16.xpose.msra.mxu0 0
        %689 = vmatpush.bf16.xpose.msra.mxu0 0
        %690 = vmatpush.bf16.xpose.msra.mxu0 0
        %691 = vmatpush.bf16.xpose.msra.mxu0 %v682
        %692 = vmatmul.bf16.gmra.mxu0 %v679
        %v693 = vpop.f32.mrf.mxu0
        %v694 = vadd.f32 0.0, %v693
        %v695 = vpop.f32.mrf.mxu0
        %696 = vdwg.mxu0
        %v697 = vmul.f32 %v694, 0.35355338
        %v698 = vsel %vm611, %v697, -3.4028235e+38
        %v699 = vsel %vm617, %v698, -inf
        %700 = vmax.xlane.f32.xlu0 %v699
        %v701 = vpop.xlane.xlu0 %700
        %v702 = vsub.f32 %v698, %v701
        %v703 = vmul.f32 %v702, 1.442695
        %v704 = vpow.pop %v703
        %v705 = vsel %vm617, %v704, 0.0
        %706 = vadd.xlane.f32.xlu0 %v705
        %v707 = vpop.xlane.xlu0 %706
        %v708 = vrcp.pop %v707
        %v709 = vmul.f32 %v704, %v708
        %v710 = vpack.c.bf16 %v709, %v709
        %711 = vrot.lane.b32.xlu0 %v614, 56
        %v712 = vpop.permute.xlu0 %711
        %v714 = vsel %vm617, %v710, 0
        %v717 = vsel %vm656, %v712, 0
        %719 = vmatpush.bf16.msra.mxu0 0
        %720 = vmatpush.bf16.msra.mxu0 0
        %721 = vmatpush.bf16.msra.mxu0 0
        %722 = vmatpush.bf16.msra.mxu0 0
        %723 = vmatpush.bf16.msra.mxu0 0
        %724 = vmatpush.bf16.msra.mxu0 0
        %725 = vmatpush.bf16.msra.mxu0 0
        %726 = vmatpush.bf16.msra.mxu0 %v717
        %727 = vmatmul.bf16.gmra.mxu0 %v714
        %v728 = vpop.f32.mrf.mxu0
        %v729 = vadd.f32 0.0, %v728
        %v730 = vpop.f32.mrf.mxu0
        %731 = vdwg.mxu0
        %733 = vrot.lane.b32.xlu0 %v729, 8
        %v734 = vpop.permute.xlu0 %733
        %vm736 = vcmask 130112
        %737 = vst.msk [vmem:[#allocation2] sm:$0xff] %vm736, %v734
        %738 = vrot.lane.b32.xlu0 %v614, 112
        %v739 = vpop.permute.xlu0 %738
        %740 = vrot.lane.b32.xlu0 %v614, 80
        %v741 = vpop.permute.xlu0 %740
        %v743 = vsel %vm617, %v739, 0
        %v746 = vsel %vm617, %v741, 0
        %748 = vmatpush.bf16.xpose.msra.mxu0 0
        %749 = vmatpush.bf16.xpose.msra.mxu0 0
        %750 = vmatpush.bf16.xpose.msra.mxu0 0
        %751 = vmatpush.bf16.xpose.msra.mxu0 0
        %752 = vmatpush.bf16.xpose.msra.mxu0 0
        %753 = vmatpush.bf16.xpose.msra.mxu0 0
        %754 = vmatpush.bf16.xpose.msra.mxu0 0
        %755 = vmatpush.bf16.xpose.msra.mxu0 %v746
        %756 = vmatmul.bf16.gmra.mxu0 %v743
        %v757 = vpop.f32.mrf.mxu0
        %v758 = vadd.f32 0.0, %v757
        %v759 = vpop.f32.mrf.mxu0
        %760 = vdwg.mxu0
        %v761 = vmul.f32 %v758, 0.35355338
        %v762 = vsel %vm611, %v761, -3.4028235e+38
        %v763 = vsel %vm617, %v762, -inf
        %764 = vmax.xlane.f32.xlu0 %v763
        %v765 = vpop.xlane.xlu0 %764
        %v766 = vsub.f32 %v762, %v765
        %v767 = vmul.f32 %v766, 1.442695
        %v768 = vpow.pop %v767
        %v769 = vsel %vm617, %v768, 0.0
        %770 = vadd.xlane.f32.xlu0 %v769
        %v771 = vpop.xlane.xlu0 %770
        %v772 = vrcp.pop %v771
        %v773 = vmul.f32 %v768, %v772
        %v774 = vpack.c.bf16 %v773, %v773
        %775 = vrot.lane.b32.xlu0 %v614, 48
        %v776 = vpop.permute.xlu0 %775
        %v778 = vsel %vm617, %v774, 0
        %v781 = vsel %vm656, %v776, 0
        %783 = vmatpush.bf16.msra.mxu0 0
        %784 = vmatpush.bf16.msra.mxu0 0
        %785 = vmatpush.bf16.msra.mxu0 0
        %786 = vmatpush.bf16.msra.mxu0 0
        %787 = vmatpush.bf16.msra.mxu0 0
        %788 = vmatpush.bf16.msra.mxu0 0
        %789 = vmatpush.bf16.msra.mxu0 0
        %790 = vmatpush.bf16.msra.mxu0 %v781
        %791 = vmatmul.bf16.gmra.mxu0 %v778
        %v792 = vpop.f32.mrf.mxu0
        %v793 = vadd.f32 0.0, %v792
        %v794 = vpop.f32.mrf.mxu0
        %795 = vdwg.mxu0
        %797 = vrot.lane.b32.xlu0 %v793, 16
        %v798 = vpop.permute.xlu0 %797
        %vm800 = vcmask 195712
        %801 = vst.msk [vmem:[#allocation2] sm:$0xff] %vm800, %v798
        %802 = vrot.lane.b32.xlu0 %v614, 104
        %v803 = vpop.permute.xlu0 %802
        %804 = vrot.lane.b32.xlu0 %v614, 72
        %v805 = vpop.permute.xlu0 %804
        %v807 = vsel %vm617, %v803, 0
        %v810 = vsel %vm617, %v805, 0
        %812 = vmatpush.bf16.xpose.msra.mxu0 0
        %813 = vmatpush.bf16.xpose.msra.mxu0 0
        %814 = vmatpush.bf16.xpose.msra.mxu0 0
        %815 = vmatpush.bf16.xpose.msra.mxu0 0
        %816 = vmatpush.bf16.xpose.msra.mxu0 0
        %817 = vmatpush.bf16.xpose.msra.mxu0 0
        %818 = vmatpush.bf16.xpose.msra.mxu0 0
        %819 = vmatpush.bf16.xpose.msra.mxu0 %v810
        %820 = vmatmul.bf16.gmra.mxu0 %v807
        %v821 = vpop.f32.mrf.mxu0
        %v822 = vadd.f32 0.0, %v821
        %v823 = vpop.f32.mrf.mxu0
        %824 = vdwg.mxu0
        %v825 = vmul.f32 %v822, 0.35355338
        %v826 = vsel %vm611, %v825, -3.4028235e+38
        %v827 = vsel %vm617, %v826, -inf
        %828 = vmax.xlane.f32.xlu0 %v827
        %v829 = vpop.xlane.xlu0 %828
        %v830 = vsub.f32 %v826, %v829
        %v831 = vmul.f32 %v830, 1.442695
        %v832 = vpow.pop %v831
        %v833 = vsel %vm617, %v832, 0.0
        %834 = vadd.xlane.f32.xlu0 %v833
        %v835 = vpop.xlane.xlu0 %834
        %v836 = vrcp.pop %v835
        %v837 = vmul.f32 %v832, %v836
        %v838 = vpack.c.bf16 %v837, %v837
        %839 = vrot.lane.b32.xlu0 %v614, 40
        %v840 = vpop.permute.xlu0 %839
        %v842 = vsel %vm617, %v838, 0
        %v845 = vsel %vm656, %v840, 0
        %847 = vmatpush.bf16.msra.mxu0 0
        %848 = vmatpush.bf16.msra.mxu0 0
        %849 = vmatpush.bf16.msra.mxu0 0
        %850 = vmatpush.bf16.msra.mxu0 0
        %851 = vmatpush.bf16.msra.mxu0 0
        %852 = vmatpush.bf16.msra.mxu0 0
        %853 = vmatpush.bf16.msra.mxu0 0
        %854 = vmatpush.bf16.msra.mxu0 %v845
        %855 = vmatmul.bf16.gmra.mxu0 %v842
        %v856 = vpop.f32.mrf.mxu0
        %v857 = vadd.f32 0.0, %v856
        %v858 = vpop.f32.mrf.mxu0
        %859 = vdwg.mxu0
        %861 = vrot.lane.b32.xlu0 %v857, 24
        %v862 = vpop.permute.xlu0 %861
        %vm864 = vcmask 261312
        %865 = vst.msk [vmem:[#allocation2] sm:$0xff] %vm864, %v862
        %v866 = vld [vmem:[#allocation2] sm:$0xff]
        %v867 = vpack.c.bf16 %v866, %v866
        %v868 = vld [vmem:[%s6] sm:$0xf]
        %v869 = vld [vmem:[%s6 + $0x4] sm:$0xf]
        %v870 = vld [vmem:[%s6 + $0x8] sm:$0xf]
        %v871 = vld [vmem:[%s6 + $0xc] sm:$0xf]
        %v872 = vld [vmem:[%s7] sm:$0x1]
        %v874 = vperm.slane %v872, 0
        %v880 = vunpack.c.l.b16 %v868
        %v881 = vunpack.c.l.b16 %v869
        %v882 = vunpack.c.l.b16 %v870
        %v883 = vunpack.c.l.b16 %v871
        %v884 = vpack.c.b16 %v881, %v880
        %v885 = vpack.c.b16 %v883, %v882
        %v889 = vsel %vm525, %v867, 0
        %891 = vmatpush.bf16.msra.mxu0 0
        %892 = vmatpush.bf16.msra.mxu0 0
        %893 = vmatpush.bf16.msra.mxu0 0
        %894 = vmatpush.bf16.msra.mxu0 0
        %895 = vmatpush.bf16.msra.mxu0 0
        %896 = vmatpush.bf16.msra.mxu0 0
        %897 = vmatpush.bf16.msra.mxu0 %v885
        %898 = vmatpush.bf16.msra.mxu0 %v884
        %899 = vmatmul.bf16.gmra.mxu0 %v889
        %v900 = vpop.f32.mrf.mxu0
        %v901 = vadd.f32 %v874, %v900
        %v902 = vpop.f32.mrf.mxu0
        %903 = vdwg.mxu0
        %v904 = vadd.f32 %v524, %v901
        %v905 = vld [vmem:[%s8] sm:$0x1]
        %v906 = vld [vmem:[%s9] sm:$0x1]
        %v907 = vsel %vm525, %v904, 0.0
        %908 = vadd.xlane.f32.xlu0 %v907
        %v909 = vpop.xlane.xlu0 %908
        %v910 = vmul.f32 %v909, %v535
        %v911 = vsub.f32 %v904, %v910
        %v912 = vmul.f32 %v911, %v911
        %v913 = vsel %vm525, %v912, 0.0
        %914 = vadd.xlane.f32.xlu0 %v913
        %v915 = vpop.xlane.xlu0 %914
        %v916 = vmul.f32 %v915, %v535
        %v917 = vadd.f32 %v916, 1e-05
        %v918 = vrsqrt.pop %v917
        %v919 = vmul.f32 %v918, %v917
        %v920 = vmul.f32 %v919, %v918
        %v921 = vmul.f32 0.5, %v920
        %v922 = vsub.f32 1.5, %v921
        %v923 = vmul.f32 %v918, %v922
        %vm924 = vweird.f32 %v917
        %vm925 = vweird.f32 %v918
        %vm926 = vmor %vm924, %vm925
        %v927 = vsel %vm926, %v918, %v923
        %v928 = vmul.f32 %v911, %v927
        %v930 = vperm.slane %v905, 0
        %v932 = vmul.f32 %v928, %v930
        %v934 = vperm.slane %v906, 0
        %v936 = vadd.f32 %v932, %v934
        %v937 = vpack.c.bf16 %v936, %v936
        %v938 = vld [vmem:[%s10] sm:$0xf]
        %v939 = vld [vmem:[%s10 + $0x4] sm:$0xf]
        %v940 = vld [vmem:[%s10 + $0x8] sm:$0xf]
        %v941 = vld [vmem:[%s10 + $0xc] sm:$0xf]
        %v942 = vld [vmem:[%s11] sm:$0x1]
        %v944 = vperm.slane %v942, 0
        %v950 = vunpack.c.l.b16 %v938
        %v951 = vunpack.c.l.b16 %v939
        %v952 = vunpack.c.l.b16 %v940
        %v953 = vunpack.c.l.b16 %v941
        %v954 = vpack.c.b16 %v951, %v950
        %v955 = vpack.c.b16 %v953, %v952
        %v959 = vsel %vm525, %v937, 0
        %961 = vmatpush.bf16.msra.mxu0 0
        %962 = vmatpush.bf16.msra.mxu0 0
        %963 = vmatpush.bf16.msra.mxu0 0
        %964 = vmatpush.bf16.msra.mxu0 0
        %965 = vmatpush.bf16.msra.mxu0 0
        %966 = vmatpush.bf16.msra.mxu0 0
        %967 = vmatpush.bf16.msra.mxu0 %v955
        %968 = vmatpush.bf16.msra.mxu0 %v954
        %969 = vmatmul.bf16.gmra.mxu0 %v959
        %v970 = vpop.f32.mrf.mxu0
        %v971 = vadd.f32 %v944, %v970
        %v972 = vpop.f32.mrf.mxu0
        %973 = vdwg.mxu0
        %v974 = vmul.f32 %v971, 1.702
        %v975 = vxor.u32 %v974, 2147483648
        %v976 = vmul.f32 %v975, 1.442695
        %v977 = vpow.pop %v976
        %v978 = vadd.f32 %v977, 1.0
        %v979 = vrcp.pop %v978
        %v980 = vmul.f32 %v978, %v979
        %v981 = vsub.f32 1.0, %v980
        %v982 = vmul.f32 %v979, %v981
        %v983 = vadd.f32 %v979, %v982
        %vm984 = vweird.f32 %v978
        %vm985 = vweird.f32 %v979
        %vm986 = vmor %vm984, %vm985
        %v987 = vsel %vm986, %v979, %v983
        %v988 = vand.u32 2147483647, %v978
        %vm989 = vcmp.eq.f32.partialorder %v988, 8.507059e+37
        %v990 = vand.u32 %v978, 2147483648
        %v991 = vor.u32 1.1754944e-38, %v990
        %v992 = vsel %vm989, %v991, %v987
        %v993 = vmul.f32 1.0, %v992
        %v994 = vmul.f32 %v971, %v993
        %v995 = vpack.c.bf16 %v994, %v994
        %v996 = vld [vmem:[%s12] sm:$0xf]
        %v997 = vld [vmem:[%s12 + $0x4] sm:$0xf]
        %v998 = vld [vmem:[%s12 + $0x8] sm:$0xf]
        %v999 = vld [vmem:[%s12 + $0xc] sm:$0xf]
        %v1000 = vld [vmem:[%s12 + $0x10] sm:$0xf]
        %v1001 = vld [vmem:[%s12 + $0x14] sm:$0xf]
        %v1002 = vld [vmem:[%s12 + $0x18] sm:$0xf]
        %v1003 = vld [vmem:[%s12 + $0x1c] sm:$0xf]
        %v1004 = vld [vmem:[%s13] sm:$0x1]
        %v1006 = vperm.slane %v1004, 0
        %v1016 = vunpack.c.l.b16 %v996
        %v1017 = vunpack.c.l.b16 %v997
        %v1018 = vunpack.c.l.b16 %v998
        %v1019 = vunpack.c.l.b16 %v999
        %v1020 = vunpack.c.l.b16 %v1000
        %v1021 = vunpack.c.l.b16 %v1001
        %v1022 = vunpack.c.l.b16 %v1002
        %v1023 = vunpack.c.l.b16 %v1003
        %v1024 = vpack.c.b16 %v1017, %v1016
        %v1025 = vpack.c.b16 %v1019, %v1018
        %v1026 = vpack.c.b16 %v1021, %v1020
        %v1027 = vpack.c.b16 %v1023, %v1022
        %vm1032 = vcmask 523264
        %v1034 = vsel %vm1032, %v995, 0
        %1036 = vmatpush.bf16.msra.mxu0 0
        %1037 = vmatpush.bf16.msra.mxu0 0
        %1038 = vmatpush.bf16.msra.mxu0 0
        %1039 = vmatpush.bf16.msra.mxu0 0
        %1040 = vmatpush.bf16.msra.mxu0 %v1027
        %1041 = vmatpush.bf16.msra.mxu0 %v1026
        %1042 = vmatpush.bf16.msra.mxu0 %v1025
        %1043 = vmatpush.bf16.msra.mxu0 %v1024
        %1044 = vmatmul.bf16.gmra.mxu0 %v1034
        %v1045 = vpop.f32.mrf.mxu0
        %v1046 = vadd.f32 %v1006, %v1045
        %v1047 = vpop.f32.mrf.mxu0
        %1048 = vdwg.mxu0
        %v1049 = vadd.f32 %v904, %v1046
        %v1050 = vpack.c.bf16 %v1049, %v1049
        %vm1051 = vcmask 257024
        %1052 = vst.msk [vmem:[%s519] sm:$0xf] %vm1051, %v1050
        %s1053 = sand.u32 %s346, 1
        %s1054 = scalar_lea.sflag [#allocation5], %s1053
        %s1055 = sand.u32 %s346, 1
        %s1056 = smul.addr %s1055, 4
        %s1057 = scalar_lea.vmem [#allocation8], %s1056
        // Predicated region
        $region85: #{tpu_custom_call.1} parent=75 // pred_check
          %p1058 = pneg %p356
        $region86: #{tpu_custom_call.1} parent=75 // pred_check_branch
          %1060 = sbr.rel (%p1058) target = $region88
        $region87: #{tpu_custom_call.1} parent=75 // pred_region
          %1062 = vsyncadd %s1054, 0
          %s1063 = smul.addr %s34, 4
          %s1064 = scalar_lea.hbm %s14, %s1063
          %s1066 = sshll.u32 %s1057, 4
          %s1067 = int_to_ptr.vmem [resolvable:$true] %s1066
          %s1068 = sshll.u32 %s1064, 4
          %s1069 = int_to_ptr.hbm [resolvable:$true] %s1068
          %1071 = dma.vmem_to_hbm [thread:$0]  %s1067, 64, %s1069, %s1054
        $region88: #{tpu_custom_call.1} parent=75 // pred_fallthru
          _
      $region76: #{tpu_custom_call.1} parent=5 // pred_fallthru
        _
      %p1072 = scmp.le.s32.totalorder 2, %s29
      // Predicated region
      $region89: #{tpu_custom_call.1} parent=5 // pred_check
        %p1073 = pneg %p1072
      $region90: #{tpu_custom_call.1} parent=5 // pred_check_branch
        %1075 = sbr.rel (%p1073) target = $region92
      $region91: #{tpu_custom_call.1} parent=5 // pred_region
        %s1076 = ssub.s32 %s29, 2
        // Predicated region
        $region93: #{tpu_custom_call.1} parent=91 // pred_check
          %p1077 = pneg %p362
        $region94: #{tpu_custom_call.1} parent=91 // pred_check_branch
          %1079 = sbr.rel (%p1077) target = $region96
        $region95: #{tpu_custom_call.1} parent=91 // pred_region
          %s1080 = sand.u32 %s347, 1
          %s1081 = scalar_lea.sflag [#allocation5], %s1080
          %s1082 = sand.u32 %s347, 1
          %s1083 = smul.addr %s1082, 4
          %s1084 = scalar_lea.vmem [#allocation8], %s1083
          %1086 = dma.done %s1081, 64
        $region96: #{tpu_custom_call.1} parent=91 // pred_fallthru
          _
      $region92: #{tpu_custom_call.1} parent=5 // pred_fallthru
        _
    $region6: #{tpu_custom_call.1} parent=1 // loop_footer
      %s33 = sadd.s32 1, %s29
    $region7: #{tpu_custom_call.1} parent=1 // loop_footer_branch
      %28 = sbr.rel target = $region3
    $region8: #{tpu_custom_call.1} parent=1 // loop_exit
      _
    %1087 = vsyncpa [#allocation4], 1
    %s1088 = scalar_lea.sflag [#allocation4], 1
    %1089 = vsyncpa %s1088, 1
    %1090 = vsyncpa [#allocation7], 1
    %s1091 = scalar_lea.sflag [#allocation7], 1
    %1092 = vsyncpa %s1091, 1
    %1093 = vsyncpa [#allocation5], 1
    %s1094 = scalar_lea.sflag [#allocation5], 1
    %1095 = vsyncpa %s1094, 1

</llo_original>
